<compile_context>
chip_gen: v7x
topology: tpu7x:2x2x1
jax: 0.10.0
libtpu: 0.0.40
codegen_flags: <defaults>
</compile_context>

<pallas_src>
from functools import partial

import jax
import jax.numpy as jnp
from jax.experimental import pallas as pl
from jax.experimental.pallas import tpu as pltpu


def polarnet_kernel(x_ref, w1_ref, b1_ref, w2_ref, b2_ref, out_ref, *,
                    hidden_dtype):
    # x_ref:  (2, TR, 128)   points dense over (sublane, lane)
    # w1_ref: (H, 2)  b1_ref: (H, 1)  w2_ref: (H, 1)  b2_ref: (1, 1)
    # out_ref: (TR, 128)
    px = x_ref[0, :, :]                       # (TR, 128)
    py = x_ref[1, :, :]                       # (TR, 128)

    # cartesian -> polar on fully dense vregs (8/8 sublanes populated)
    r = jnp.sqrt(px * px + py * py)           # (TR, 128)
    a = jnp.arctan2(py, px)                   # (TR, 128)

    w1 = w1_ref[...]                          # (H, 2), torch layout
    b1 = b1_ref[...]                          # (H, 1)
    # Hidden pre-activation in f32: K == 2 contraction as two broadcast FMAs.
    pre = (w1[:, 0:1, None] * r
           + w1[:, 1:2, None] * a
           + b1[:, :, None])                  # (H, TR, 128) f32
    # tanh on the EUP; bf16 opt-in halves the slab and ~2x EUP on v6e/v7x.
    h = jnp.tanh(pre.astype(hidden_dtype))    # (H, TR, 128)

    w2 = w2_ref[...].astype(hidden_dtype)     # (H, 1)
    # Output layer: weighted reduction over the leading H axis (vreg adds),
    # accumulated in f32 regardless of hidden_dtype.
    logits = jnp.sum((h * w2[:, :, None]).astype(jnp.float32), axis=0)
    logits = logits + b2_ref[...]             # (TR, 128) + (1, 1)
    out_ref[...] = jax.nn.sigmoid(logits)     # dense full-width store


def _choose_row_tile(num_hid, n):
    """Points are laid out as an (rows, 128) grid (rows a multiple of 8).
    Returns (row_tile, rows_pad): row_tile is a multiple of 8 chosen from a
    ~20 MiB working-set budget, and rows_pad = row_tile * num_tiles is
    balanced so the last tile is not dominated by padding."""
    rows_min = pl.cdiv(pl.cdiv(n, 128), 8) * 8
    # Bytes per row of 128 points: ~2x the (H, TR, 128) f32 hidden slab
    # (slab + fused-op temporaries) plus ~8 dense (TR, 128) f32 temps.
    bytes_per_row = 128 * 4 * (2 * num_hid + 8)
    budget = 20 * 1024 * 1024
    target_rows = max(8, (budget // bytes_per_row) // 8 * 8)
    if rows_min <= target_rows:
        return rows_min, rows_min             # single tile, minimal padding
    num_tiles = pl.cdiv(rows_min, target_rows)
    row_tile = pl.cdiv(pl.cdiv(rows_min, num_tiles), 8) * 8
    return row_tile, row_tile * num_tiles


def polarnet_forward(x, w1, b1, w2, b2, *, hidden_dtype=jnp.float32):
    """x: (N, 2) f32.  w1: (H, 2), b1: (H, 1), w2: (H, 1), b2: (1, 1).
    Returns (N, 1) f32 sigmoid output (matches PolarNet.forward).
    hidden_dtype=jnp.bfloat16 is an opt-in for v6e/v7x (bf16 EUP/VPU); keep
    the f32 default on v5e and whenever 1e-3 accuracy must be guaranteed."""
    n = x.shape[0]
    num_hid = w1.shape[0]

    row_tile, rows_pad = _choose_row_tile(num_hid, n)
    n_pad = rows_pad * 128
    grid = (rows_pad // row_tile,)

    # Single relayout pass (pad + transpose + reshape, fused by XLA) instead of
    # zeros+scatter; point i lands at grid position (i // 128, i % 128).
    # Padded points go through arctan2(0, 0) == 0 and are sliced away below.
    # TODO(synk): the transpose still costs one extra HBM pass over x; removing
    # it requires an in-kernel even/odd lane deinterleave of the raw (N, 2) data.
    xt = jnp.pad(x.T, ((0, 0), (0, n_pad - n))).reshape(2, rows_pad, 128)

    # Honest VMEM budget: double-buffered in/out streams + hidden slab (x2 for
    # fused-op temporaries) + dense per-point temps + resident weights + slack.
    stream = 2 * (2 + 1) * row_tile * 128 * 4      # (2,TR,128) in + (TR,128) out, x2
    hidden = 2 * num_hid * row_tile * 128 * 4      # (H,TR,128) f32 slab, x2
    temps = 8 * row_tile * 128 * 4                 # px/py/r/a/logits/... tiles
    vmem_bytes = int(min(max(stream + hidden + temps + (2 << 20), 8 << 20),
                         48 << 20))

    out = pl.pallas_call(
        partial(polarnet_kernel, hidden_dtype=hidden_dtype),
        out_shape=jax.ShapeDtypeStruct((rows_pad, 128), jnp.float32),
        grid=grid,
        in_specs=[
            pl.BlockSpec((2, row_tile, 128), lambda i: (0, i, 0)),  # streamed x
            pl.BlockSpec((num_hid, 2), lambda i: (0, 0)),           # resident W1
            pl.BlockSpec((num_hid, 1), lambda i: (0, 0)),           # resident b1
            pl.BlockSpec((num_hid, 1), lambda i: (0, 0)),           # resident w2
            pl.BlockSpec((1, 1), lambda i: (0, 0)),                 # resident b2
        ],
        out_specs=pl.BlockSpec((row_tile, 128), lambda i: (i, 0)),  # dense out
        compiler_params=pltpu.CompilerParams(
            dimension_semantics=("parallel",),   # row tiles shard across TCs
            vmem_limit_bytes=vmem_bytes,
        ),
    )(xt, w1, b1, w2, b2)

    return out.reshape(-1)[:n].reshape(n, 1)


def init_params(key, num_hid):
    """Deterministic init matching nn.Linear default U[-1/sqrt(fan_in), ...]."""
    k1, k2, k3, k4 = jax.random.split(key, 4)
    bound1 = 1.0 / jnp.sqrt(2.0)             # fan_in = 2
    bound2 = 1.0 / jnp.sqrt(float(num_hid))  # fan_in = num_hid
    w1 = jax.random.uniform(k1, (num_hid, 2), jnp.float32, -bound1, bound1)
    b1 = jax.random.uniform(k2, (num_hid, 1), jnp.float32, -bound1, bound1)
    w2 = jax.random.uniform(k3, (num_hid, 1), jnp.float32, -bound2, bound2)
    b2 = jax.random.uniform(k4, (1, 1), jnp.float32, -bound2, bound2)
    return w1, b1, w2, b2


def polarnet_reference(x, w1, b1, w2, b2):
    px, py = x[:, 0:1], x[:, 1:2]
    r = jnp.sqrt(px * px + py * py)
    a = jnp.arctan2(py, px)
    ans = jnp.concatenate([r, a], axis=1)            # (N, 2)
    h = jnp.tanh(ans @ w1.T + b1[:, 0])              # (N, H)
    return jax.nn.sigmoid(h @ w2 + b2[0, 0])         # (N, 1)


if __name__ == "__main__":
    key = jax.random.PRNGKey(0)
    kx, kp = jax.random.split(key)

    N, NUM_HID = 8, 32
    x = jax.random.normal(kx, (N, 2), dtype=jnp.float32)
    w1, b1, w2, b2 = init_params(kp, NUM_HID)

    out = polarnet_forward(x, w1, b1, w2, b2)
    out = jax.block_until_ready(out)

    ref = polarnet_reference(x, w1, b1, w2, b2)
    assert out.shape == (N, 1), out.shape
    assert jnp.allclose(out, ref, atol=1e-3, rtol=1e-3), (out, ref)

    print("KERNEL_OK")
</pallas_src>

<mosaic_0001>
module attributes {stable_mosaic.version = 11 : i64} {
  func.func @polarnet_kernel(%arg0: i32, %arg1: memref<2x8x128xf32, #tpu.memory_space<vmem>>, %arg2: memref<32x2xf32, #tpu.memory_space<vmem>>, %arg3: memref<32x1xf32, #tpu.memory_space<vmem>>, %arg4: memref<32x1xf32, #tpu.memory_space<vmem>>, %arg5: memref<1x1xf32, #tpu.memory_space<vmem>>, %arg6: memref<8x128xf32, #tpu.memory_space<vmem>>) attributes {dimension_semantics = [#tpu.dimension_semantics<parallel>], iteration_bounds = array<i64: 1>, scalar_prefetch = 0 : i64, scratch_operands = 0 : i64, tpu.core_type = #tpu.core_type<tc>, window_params = [{transform_indices = @transform_0, window_bounds = array<i64: 2, 8, 128>}, {pipeline_mode = #tpu.pipeline_mode<synchronous>, transform_indices = @transform_1, window_bounds = array<i64: 32, 2>}, {pipeline_mode = #tpu.pipeline_mode<synchronous>, transform_indices = @transform_2, window_bounds = array<i64: 32, 1>}, {pipeline_mode = #tpu.pipeline_mode<synchronous>, transform_indices = @transform_3, window_bounds = array<i64: 32, 1>}, {pipeline_mode = #tpu.pipeline_mode<synchronous>, transform_indices = @transform_4, window_bounds = array<i64: 1, 1>}, {transform_indices = @transform_5, window_bounds = array<i64: 8, 128>}]} {
    %c0 = arith.constant 0 : index
    %c0_0 = arith.constant 0 : index
    %c0_1 = arith.constant 0 : index
    %0 = vector.load %arg1[%c0, %c0_0, %c0_1] : memref<2x8x128xf32, #tpu.memory_space<vmem>>, vector<1x8x128xf32>
    %1 = vector.shape_cast %0 : vector<1x8x128xf32> to vector<8x128xf32>
    %c1 = arith.constant 1 : index
    %c0_2 = arith.constant 0 : index
    %c0_3 = arith.constant 0 : index
    %2 = vector.load %arg1[%c1, %c0_2, %c0_3] : memref<2x8x128xf32, #tpu.memory_space<vmem>>, vector<1x8x128xf32>
    %3 = vector.shape_cast %2 : vector<1x8x128xf32> to vector<8x128xf32>
    %4 = arith.mulf %1, %1 : vector<8x128xf32>
    %5 = arith.mulf %3, %3 : vector<8x128xf32>
    %6 = arith.addf %4, %5 : vector<8x128xf32>
    %7 = math.sqrt %6 : vector<8x128xf32>
    %8 = math.atan2 %3, %1 : vector<8x128xf32>
    %c0_4 = arith.constant 0 : index
    %c0_5 = arith.constant 0 : index
    %9 = vector.load %arg2[%c0_4, %c0_5] : memref<32x2xf32, #tpu.memory_space<vmem>>, vector<32x2xf32>
    %c0_6 = arith.constant 0 : index
    %c0_7 = arith.constant 0 : index
    %10 = vector.load %arg3[%c0_6, %c0_7] : memref<32x1xf32, #tpu.memory_space<vmem>>, vector<32x1xf32>
    %11 = vector.extract_strided_slice %9 {offsets = [0, 0], sizes = [32, 1], strides = [1, 1]} : vector<32x2xf32> to vector<32x1xf32>
    %12 = vector.shape_cast %11 : vector<32x1xf32> to vector<32x1x1xf32>
    %13 = vector.shape_cast %7 : vector<8x128xf32> to vector<1x8x128xf32>
    %14 = vector.broadcast %12 : vector<32x1x1xf32> to vector<32x8x128xf32>
    %15 = vector.broadcast %13 : vector<1x8x128xf32> to vector<32x8x128xf32>
    %16 = arith.mulf %14, %15 : vector<32x8x128xf32>
    %17 = vector.extract_strided_slice %9 {offsets = [0, 1], sizes = [32, 1], strides = [1, 1]} : vector<32x2xf32> to vector<32x1xf32>
    %18 = vector.shape_cast %17 : vector<32x1xf32> to vector<32x1x1xf32>
    %19 = vector.shape_cast %8 : vector<8x128xf32> to vector<1x8x128xf32>
    %20 = vector.broadcast %18 : vector<32x1x1xf32> to vector<32x8x128xf32>
    %21 = vector.broadcast %19 : vector<1x8x128xf32> to vector<32x8x128xf32>
    %22 = arith.mulf %20, %21 : vector<32x8x128xf32>
    %23 = arith.addf %16, %22 : vector<32x8x128xf32>
    %24 = vector.shape_cast %10 : vector<32x1xf32> to vector<32x1x1xf32>
    %25 = vector.broadcast %24 : vector<32x1x1xf32> to vector<32x8x128xf32>
    %26 = arith.addf %23, %25 : vector<32x8x128xf32>
    %27 = math.tanh %26 : vector<32x8x128xf32>
    %c0_8 = arith.constant 0 : index
    %c0_9 = arith.constant 0 : index
    %28 = vector.load %arg4[%c0_8, %c0_9] : memref<32x1xf32, #tpu.memory_space<vmem>>, vector<32x1xf32>
    %29 = vector.shape_cast %28 : vector<32x1xf32> to vector<32x1x1xf32>
    %30 = vector.broadcast %29 : vector<32x1x1xf32> to vector<32x8x128xf32>
    %31 = arith.mulf %27, %30 : vector<32x8x128xf32>
    %cst = arith.constant dense<0.000000e+00> : vector<8x128xf32>
    %32 = vector.multi_reduction <add>, %31, %cst [0] : vector<32x8x128xf32> to vector<8x128xf32>
    %c0_10 = arith.constant 0 : index
    %c0_11 = arith.constant 0 : index
    %33 = vector.load %arg5[%c0_10, %c0_11] : memref<1x1xf32, #tpu.memory_space<vmem>>, vector<1x1xf32>
    %34 = vector.broadcast %33 : vector<1x1xf32> to vector<8x128xf32>
    %35 = arith.addf %32, %34 : vector<8x128xf32>
    %36 = arith.negf %35 : vector<8x128xf32>
    %37 = math.exp %36 : vector<8x128xf32>
    %cst_12 = arith.constant 1.000000e+00 : f32
    %38 = vector.broadcast %cst_12 : f32 to vector<8x128xf32>
    %39 = arith.addf %38, %37 : vector<8x128xf32>
    %40 = arith.divf %38, %39 : vector<8x128xf32>
    %c0_13 = arith.constant 0 : index
    %c0_14 = arith.constant 0 : index
    %41 = vector.load %arg6[%c0_13, %c0_14] : memref<8x128xf32, #tpu.memory_space<vmem>>, vector<8x128xf32>
    tpu.vector_store %arg6[%c0_13, %c0_14], %40 {strides = array<i32>} : memref<8x128xf32, #tpu.memory_space<vmem>>, vector<8x128xf32>,
    return
  }
  func.func @transform_0(%arg0: i32) -> (i32, i32, i32) {
    %c0_i32 = arith.constant 0 : i32
    %c0_i32_0 = arith.constant 0 : i32
    %c0_i32_1 = arith.constant 0 : i32
    return %c0_i32, %arg0, %c0_i32_0 : i32, i32, i32
  }
  func.func @transform_1(%arg0: i32) -> (i32, i32) {
    %c0_i32 = arith.constant 0 : i32
    %c0_i32_0 = arith.constant 0 : i32
    %c0_i32_1 = arith.constant 0 : i32
    return %c0_i32, %c0_i32_0 : i32, i32
  }
  func.func @transform_2(%arg0: i32) -> (i32, i32) {
    %c0_i32 = arith.constant 0 : i32
    %c0_i32_0 = arith.constant 0 : i32
    %c0_i32_1 = arith.constant 0 : i32
    return %c0_i32, %c0_i32_0 : i32, i32
  }
  func.func @transform_3(%arg0: i32) -> (i32, i32) {
    %c0_i32 = arith.constant 0 : i32
    %c0_i32_0 = arith.constant 0 : i32
    %c0_i32_1 = arith.constant 0 : i32
    return %c0_i32, %c0_i32_0 : i32, i32
  }
  func.func @transform_4(%arg0: i32) -> (i32, i32) {
    %c0_i32 = arith.constant 0 : i32
    %c0_i32_0 = arith.constant 0 : i32
    %c0_i32_1 = arith.constant 0 : i32
    return %c0_i32, %c0_i32_0 : i32, i32
  }
  func.func @transform_5(%arg0: i32) -> (i32, i32) {
    %c0_i32 = arith.constant 0 : i32
    %c0_i32_0 = arith.constant 0 : i32
    return %arg0, %c0_i32 : i32, i32
  }
}

</mosaic_0001>

<llo_original>
// kernel: tpu_custom_call.1
$region0: #{tpu_custom_call.1}
  #allocation0 [shape = 'u32[]', space=smem, size = 0x4, offset = 0x4, fixed_abs, tag = 'smem constant byte address 0x4 - core index']
  #allocation1 [shape = 'u32[144,128]{1,0:T(1,128)}', space=vmem, size = 0x12000, scoped, tag = 'internal scratch']
  #allocation2 [shape = 'f32[1,1]{1,0:T(1,128)S(1)}', space=vmem, size = 0x200, scoped, tag = 'scoped memory for tpu_custom_call.1']
  %s0 = inlined_call_operand.vmem [shape: f32[2,8,128], index: 0, kind: input, shape index: {}]
  %s1 = inlined_call_operand.vmem [shape: f32[32,2], index: 1, kind: input, shape index: {}]
  %s2 = inlined_call_operand.vmem [shape: f32[32,1], index: 2, kind: input, shape index: {}]
  %s3 = inlined_call_operand.vmem [shape: f32[32,1], index: 3, kind: input, shape index: {}]
  %s4 = inlined_call_operand.<no memory space> [shape: f32[1,1], index: 4, kind: input, shape index: {}]
  %s5 = inlined_call_operand.hbm [shape: f32[8,128], index: 5, kind: output, shape index: {}]
  %s6 = sld [smem:[#allocation0]]
  $region30: #{tpu_custom_call.1} parent=0
    _
  %s8 = ssub.s32 1, %s6
  %s9 = scalar_select 0, %s8, %s6
  %v10 = vstv %s4
  %11 = vst [vmem:[#allocation2] sm:$0x1] %v10
  $region1: #{tpu_custom_call.1} parent=0
    #allocation3 [shape = 'u8[4096]{0}', space=vmem, size = 0x1000, scoped, tag = 'output window, operand 0, single buffered']
    #allocation4 [shape = 's32[1]{0}', space=sflag, size = 0x4, scoped, tag = 'scoped memory for tpu_custom_call.1']
    %12 = vsyncpa [#allocation4], 0
    // Predicated region
    $region2: #{tpu_custom_call.1} parent=1 // pred_check
      _
    $region3: #{tpu_custom_call.1} parent=1 // pred_check_branch
      %14 = sbr.rel (0) target = $region5
    $region4: #{tpu_custom_call.1} parent=1 // pred_region
      _
    $region5: #{tpu_custom_call.1} parent=1 // pred_fallthru
      _
    // Predicated region
    $region6: #{tpu_custom_call.1} parent=1 // pred_check
      _
    $region7: #{tpu_custom_call.1} parent=1 // pred_check_branch
      %16 = sbr.rel (0) target = $region9
    $region8: #{tpu_custom_call.1} parent=1 // pred_region
      _
    $region9: #{tpu_custom_call.1} parent=1 // pred_fallthru
      _
    // Predicated region
    $region10: #{tpu_custom_call.1} parent=1 // pred_check
      _
    $region11: #{tpu_custom_call.1} parent=1 // pred_check_branch
      %18 = sbr.rel (0) target = $region13
    $region12: #{tpu_custom_call.1} parent=1 // pred_region
      _
    $region13: #{tpu_custom_call.1} parent=1 // pred_fallthru
      _
    // Predicated region
    $region14: #{tpu_custom_call.1} parent=1 // pred_check
      _
    $region15: #{tpu_custom_call.1} parent=1 // pred_check_branch
      %20 = sbr.rel (0) target = $region17
    $region16: #{tpu_custom_call.1} parent=1 // pred_region
      _
    $region17: #{tpu_custom_call.1} parent=1 // pred_fallthru
      _
    // Predicated region
    $region18: #{tpu_custom_call.1} parent=1 // pred_check
      _
    $region19: #{tpu_custom_call.1} parent=1 // pred_check_branch
      %22 = sbr.rel (0) target = $region21
    $region20: #{tpu_custom_call.1} parent=1 // pred_region
      _
    $region21: #{tpu_custom_call.1} parent=1 // pred_fallthru
      _
    %v23 = vld [vmem:[%s0] sm:$0xff]
    %s24 = scalar_lea.vmem %s0, 8
    %v25 = vld [vmem:[%s24] sm:$0xff]
    %v26 = vmul.f32 %v23, %v23
    %v27 = vmul.f32 %v25, %v25
    %v28 = vadd.f32 %v26, %v27
    %v29 = vrsqrt.pop %v28
    %v30 = vmul.f32 %v28, %v29
    %vm31 = vcmp.eq.f32.partialorder %v28, inf
    %v32 = vsel %vm31, %v28, %v30
    %vm33 = vcmp.eq.f32.partialorder %v28, 0.0
    %v34 = vand.u32 %v28, 2147483648
    %v35 = vsel %vm33, %v34, %v32
    %v36 = vand.u32 2147483647, %v23
    %v37 = vand.u32 2147483647, %v25
    %v38 = vmin.f32 %v36, %v37
    %v39 = vmax.f32 %v36, %v37
    %v40 = vrcp.pop %v39
    %v41 = vmul.f32 %v38, %v40
    %v42 = vmul.f32 %v41, %v41
    %v43 = vmul.f32 0.002785687, %v42
    %v44 = vadd.f32 %v43, -0.015866
    %v45 = vmul.f32 %v44, %v42
    %v46 = vadd.f32 %v45, 0.04247222
    %v47 = vmul.f32 %v46, %v42
    %v48 = vadd.f32 %v47, -0.074975304
    %v49 = vmul.f32 %v48, %v42
    %v50 = vadd.f32 %v49, 0.1064488
    %v51 = vmul.f32 %v50, %v42
    %v52 = vadd.f32 %v51, -0.14207031
    %v53 = vmul.f32 %v52, %v42
    %v54 = vadd.f32 %v53, 0.19993454
    %v55 = vmul.f32 %v54, %v42
    %v56 = vadd.f32 %v55, -0.33333147
    %v57 = vmul.f32 %v56, %v42
    %v58 = vmul.f32 %v57, %v41
    %v59 = vadd.f32 %v58, %v41
    %vm60 = vcmp.gt.f32.partialorder %v37, %v36
    %v61 = vsub.f32 1.5707964, %v59
    %v62 = vsel %vm60, %v61, %v59
    %vm63 = vcmp.lt.f32.partialorder %v23, 0.0
    %v64 = vsub.f32 3.1415927, %v62
    %v65 = vsel %vm63, %v64, %v62
    %vm66 = vcmp.lt.s32.totalorder %v23, 0
    %v67 = vsel %vm66, 3.1415927, 0.0
    %vm68 = vcmp.eq.f32.partialorder %v25, 0.0
    %v69 = vsel %vm68, %v67, %v65
    %vm70 = vcmp.ne.f32.partialorder %v23, %v23
    %vm71 = vcmp.ne.f32.partialorder %v25, %v25
    %vm72 = vmor %vm70, %vm71
    %v73 = vsel %vm72, nan, %v69
    %vm74 = vcmp.lt.f32.partialorder %v23, 0.0
    %v75 = vsel %vm74, 2.3561945, 0.7853982
    %vm76 = vcmp.eq.s32.totalorder %v36, inf
    %vm77 = vcmp.eq.s32.totalorder %v37, inf
    %vm78 = vmand %vm76, %vm77
    %v79 = vsel %vm78, %v75, %v73
    %v80 = vand.u32 2147483647, %v79
    %v81 = vand.u32 %v25, 2147483648
    %v82 = vor.u32 %v80, %v81
    %v83 = vld [vmem:[%s1] sm:$0xff]
    %v84 = vld [vmem:[%s1 + $0x8] sm:$0xff]
    %v85 = vld [vmem:[%s1 + $0x10] sm:$0xff]
    %v86 = vld [vmem:[%s1 + $0x18] sm:$0xff]
    %v87 = vld [vmem:[%s2] sm:$0xff]
    %v88 = vld [vmem:[%s2 + $0x8] sm:$0xff]
    %v89 = vld [vmem:[%s2 + $0x10] sm:$0xff]
    %v90 = vld [vmem:[%s2 + $0x18] sm:$0xff]
    %v95 = vcombine.high %v83, %v83
    %v97 = vunpack.c.l.s4 1966171168
    %v98 = vunpack.c.0.s8 %v97
    %v99 = vlaneseq
    %v100 = vshrl.u32 %v99, 7
    %v101 = vsub.s32 %v98, %v100
    %v102 = vrot.slane %v83, %v101
    %v104 = vunpack.c.l.s4 1966171168
    %v105 = vunpack.c.0.s8 %v104
    %v106 = vlaneseq
    %v107 = vshrl.u32 %v106, 7
    %v108 = vsub.s32 %v105, %v107
    %v109 = vrot.slane %v95, %v108
    %v110 = vcombine.high %v102, %v102
    %v111 = vcombine.high %v109, %v109
    %v113 = vunpack.c.l.s4 1966171168
    %v114 = vunpack.c.0.s8 %v113
    %v115 = vlaneseq
    %v116 = vshrl.u32 %v115, 7
    %v117 = vsub.s32 %v114, %v116
    %v118 = vrot.slane %v102, %v117
    %v120 = vunpack.c.l.s4 1966171168
    %v121 = vunpack.c.0.s8 %v120
    %v122 = vlaneseq
    %v123 = vshrl.u32 %v122, 7
    %v124 = vsub.s32 %v121, %v123
    %v125 = vrot.slane %v109, %v124
    %v127 = vunpack.c.l.s4 1966171168
    %v128 = vunpack.c.0.s8 %v127
    %v129 = vlaneseq
    %v130 = vshrl.u32 %v129, 7
    %v131 = vsub.s32 %v128, %v130
    %v132 = vrot.slane %v110, %v131
    %v134 = vunpack.c.l.s4 1966171168
    %v135 = vunpack.c.0.s8 %v134
    %v136 = vlaneseq
    %v137 = vshrl.u32 %v136, 7
    %v138 = vsub.s32 %v135, %v137
    %v139 = vrot.slane %v111, %v138
    %v140 = vcombine.high %v118, %v118
    %v141 = vcombine.high %v125, %v125
    %v142 = vcombine.high %v132, %v132
    %v143 = vcombine.high %v139, %v139
    %v144 = vcombine.high %v84, %v84
    %v146 = vunpack.c.l.s4 1966171168
    %v147 = vunpack.c.0.s8 %v146
    %v148 = vlaneseq
    %v149 = vshrl.u32 %v148, 7
    %v150 = vsub.s32 %v147, %v149
    %v151 = vrot.slane %v84, %v150
    %v153 = vunpack.c.l.s4 1966171168
    %v154 = vunpack.c.0.s8 %v153
    %v155 = vlaneseq
    %v156 = vshrl.u32 %v155, 7
    %v157 = vsub.s32 %v154, %v156
    %v158 = vrot.slane %v144, %v157
    %v159 = vcombine.high %v151, %v151
    %v160 = vcombine.high %v158, %v158
    %v162 = vunpack.c.l.s4 1966171168
    %v163 = vunpack.c.0.s8 %v162
    %v164 = vlaneseq
    %v165 = vshrl.u32 %v164, 7
    %v166 = vsub.s32 %v163, %v165
    %v167 = vrot.slane %v151, %v166
    %v169 = vunpack.c.l.s4 1966171168
    %v170 = vunpack.c.0.s8 %v169
    %v171 = vlaneseq
    %v172 = vshrl.u32 %v171, 7
    %v173 = vsub.s32 %v170, %v172
    %v174 = vrot.slane %v158, %v173
    %v176 = vunpack.c.l.s4 1966171168
    %v177 = vunpack.c.0.s8 %v176
    %v178 = vlaneseq
    %v179 = vshrl.u32 %v178, 7
    %v180 = vsub.s32 %v177, %v179
    %v181 = vrot.slane %v159, %v180
    %v183 = vunpack.c.l.s4 1966171168
    %v184 = vunpack.c.0.s8 %v183
    %v185 = vlaneseq
    %v186 = vshrl.u32 %v185, 7
    %v187 = vsub.s32 %v184, %v186
    %v188 = vrot.slane %v160, %v187
    %v189 = vcombine.high %v167, %v167
    %v190 = vcombine.high %v174, %v174
    %v191 = vcombine.high %v181, %v181
    %v192 = vcombine.high %v188, %v188
    %v193 = vcombine.high %v85, %v85
    %v195 = vunpack.c.l.s4 1966171168
    %v196 = vunpack.c.0.s8 %v195
    %v197 = vlaneseq
    %v198 = vshrl.u32 %v197, 7
    %v199 = vsub.s32 %v196, %v198
    %v200 = vrot.slane %v85, %v199
    %v202 = vunpack.c.l.s4 1966171168
    %v203 = vunpack.c.0.s8 %v202
    %v204 = vlaneseq
    %v205 = vshrl.u32 %v204, 7
    %v206 = vsub.s32 %v203, %v205
    %v207 = vrot.slane %v193, %v206
    %v208 = vcombine.high %v200, %v200
    %v209 = vcombine.high %v207, %v207
    %v211 = vunpack.c.l.s4 1966171168
    %v212 = vunpack.c.0.s8 %v211
    %v213 = vlaneseq
    %v214 = vshrl.u32 %v213, 7
    %v215 = vsub.s32 %v212, %v214
    %v216 = vrot.slane %v200, %v215
    %v218 = vunpack.c.l.s4 1966171168
    %v219 = vunpack.c.0.s8 %v218
    %v220 = vlaneseq
    %v221 = vshrl.u32 %v220, 7
    %v222 = vsub.s32 %v219, %v221
    %v223 = vrot.slane %v207, %v222
    %v225 = vunpack.c.l.s4 1966171168
    %v226 = vunpack.c.0.s8 %v225
    %v227 = vlaneseq
    %v228 = vshrl.u32 %v227, 7
    %v229 = vsub.s32 %v226, %v228
    %v230 = vrot.slane %v208, %v229
    %v232 = vunpack.c.l.s4 1966171168
    %v233 = vunpack.c.0.s8 %v232
    %v234 = vlaneseq
    %v235 = vshrl.u32 %v234, 7
    %v236 = vsub.s32 %v233, %v235
    %v237 = vrot.slane %v209, %v236
    %v238 = vcombine.high %v216, %v216
    %v239 = vcombine.high %v223, %v223
    %v240 = vcombine.high %v230, %v230
    %v241 = vcombine.high %v237, %v237
    %v242 = vcombine.high %v86, %v86
    %v244 = vunpack.c.l.s4 1966171168
    %v245 = vunpack.c.0.s8 %v244
    %v246 = vlaneseq
    %v247 = vshrl.u32 %v246, 7
    %v248 = vsub.s32 %v245, %v247
    %v249 = vrot.slane %v86, %v248
    %v251 = vunpack.c.l.s4 1966171168
    %v252 = vunpack.c.0.s8 %v251
    %v253 = vlaneseq
    %v254 = vshrl.u32 %v253, 7
    %v255 = vsub.s32 %v252, %v254
    %v256 = vrot.slane %v242, %v255
    %v257 = vcombine.high %v249, %v249
    %v258 = vcombine.high %v256, %v256
    %v260 = vunpack.c.l.s4 1966171168
    %v261 = vunpack.c.0.s8 %v260
    %v262 = vlaneseq
    %v263 = vshrl.u32 %v262, 7
    %v264 = vsub.s32 %v261, %v263
    %v265 = vrot.slane %v249, %v264
    %v267 = vunpack.c.l.s4 1966171168
    %v268 = vunpack.c.0.s8 %v267
    %v269 = vlaneseq
    %v270 = vshrl.u32 %v269, 7
    %v271 = vsub.s32 %v268, %v270
    %v272 = vrot.slane %v256, %v271
    %v274 = vunpack.c.l.s4 1966171168
    %v275 = vunpack.c.0.s8 %v274
    %v276 = vlaneseq
    %v277 = vshrl.u32 %v276, 7
    %v278 = vsub.s32 %v275, %v277
    %v279 = vrot.slane %v257, %v278
    %v281 = vunpack.c.l.s4 1966171168
    %v282 = vunpack.c.0.s8 %v281
    %v283 = vlaneseq
    %v284 = vshrl.u32 %v283, 7
    %v285 = vsub.s32 %v282, %v284
    %v286 = vrot.slane %v258, %v285
    %v287 = vcombine.high %v265, %v265
    %v288 = vcombine.high %v272, %v272
    %v289 = vcombine.high %v279, %v279
    %v290 = vcombine.high %v286, %v286
    %v291 = vlaneseq
    %v292 = vshrl.u32 %v291, 7
    %v293 = vsub.s32 0, %v292
    %v294 = vrot.slane %v118, %v293
    %v295 = vlaneseq
    %v296 = vshrl.u32 %v295, 7
    %v297 = vsub.s32 0, %v296
    %v298 = vrot.slane %v132, %v297
    %v299 = vlaneseq
    %v300 = vshrl.u32 %v299, 7
    %v301 = vsub.s32 0, %v300
    %v302 = vrot.slane %v140, %v301
    %v303 = vlaneseq
    %v304 = vshrl.u32 %v303, 7
    %v305 = vsub.s32 0, %v304
    %v306 = vrot.slane %v142, %v305
    %v307 = vlaneseq
    %v308 = vshrl.u32 %v307, 7
    %v309 = vsub.s32 0, %v308
    %v310 = vrot.slane %v125, %v309
    %v311 = vlaneseq
    %v312 = vshrl.u32 %v311, 7
    %v313 = vsub.s32 0, %v312
    %v314 = vrot.slane %v139, %v313
    %v315 = vlaneseq
    %v316 = vshrl.u32 %v315, 7
    %v317 = vsub.s32 0, %v316
    %v318 = vrot.slane %v141, %v317
    %v319 = vlaneseq
    %v320 = vshrl.u32 %v319, 7
    %v321 = vsub.s32 0, %v320
    %v322 = vrot.slane %v143, %v321
    %v323 = vlaneseq
    %v324 = vshrl.u32 %v323, 7
    %v325 = vsub.s32 0, %v324
    %v326 = vrot.slane %v167, %v325
    %v327 = vlaneseq
    %v328 = vshrl.u32 %v327, 7
    %v329 = vsub.s32 0, %v328
    %v330 = vrot.slane %v181, %v329
    %v331 = vlaneseq
    %v332 = vshrl.u32 %v331, 7
    %v333 = vsub.s32 0, %v332
    %v334 = vrot.slane %v189, %v333
    %v335 = vlaneseq
    %v336 = vshrl.u32 %v335, 7
    %v337 = vsub.s32 0, %v336
    %v338 = vrot.slane %v191, %v337
    %v339 = vlaneseq
    %v340 = vshrl.u32 %v339, 7
    %v341 = vsub.s32 0, %v340
    %v342 = vrot.slane %v174, %v341
    %v343 = vlaneseq
    %v344 = vshrl.u32 %v343, 7
    %v345 = vsub.s32 0, %v344
    %v346 = vrot.slane %v188, %v345
    %v347 = vlaneseq
    %v348 = vshrl.u32 %v347, 7
    %v349 = vsub.s32 0, %v348
    %v350 = vrot.slane %v190, %v349
    %v351 = vlaneseq
    %v352 = vshrl.u32 %v351, 7
    %v353 = vsub.s32 0, %v352
    %v354 = vrot.slane %v192, %v353
    %v355 = vlaneseq
    %v356 = vshrl.u32 %v355, 7
    %v357 = vsub.s32 0, %v356
    %v358 = vrot.slane %v216, %v357
    %v359 = vlaneseq
    %v360 = vshrl.u32 %v359, 7
    %v361 = vsub.s32 0, %v360
    %v362 = vrot.slane %v230, %v361
    %v363 = vlaneseq
    %v364 = vshrl.u32 %v363, 7
    %v365 = vsub.s32 0, %v364
    %v366 = vrot.slane %v238, %v365
    %v367 = vlaneseq
    %v368 = vshrl.u32 %v367, 7
    %v369 = vsub.s32 0, %v368
    %v370 = vrot.slane %v240, %v369
    %v371 = vlaneseq
    %v372 = vshrl.u32 %v371, 7
    %v373 = vsub.s32 0, %v372
    %v374 = vrot.slane %v223, %v373
    %v375 = vlaneseq
    %v376 = vshrl.u32 %v375, 7
    %v377 = vsub.s32 0, %v376
    %v378 = vrot.slane %v237, %v377
    %v379 = vlaneseq
    %v380 = vshrl.u32 %v379, 7
    %v381 = vsub.s32 0, %v380
    %v382 = vrot.slane %v239, %v381
    %v383 = vlaneseq
    %v384 = vshrl.u32 %v383, 7
    %v385 = vsub.s32 0, %v384
    %v386 = vrot.slane %v241, %v385
    %v387 = vlaneseq
    %v388 = vshrl.u32 %v387, 7
    %v389 = vsub.s32 0, %v388
    %v390 = vrot.slane %v265, %v389
    %v391 = vlaneseq
    %v392 = vshrl.u32 %v391, 7
    %v393 = vsub.s32 0, %v392
    %v394 = vrot.slane %v279, %v393
    %v395 = vlaneseq
    %v396 = vshrl.u32 %v395, 7
    %v397 = vsub.s32 0, %v396
    %v398 = vrot.slane %v287, %v397
    %v399 = vlaneseq
    %v400 = vshrl.u32 %v399, 7
    %v401 = vsub.s32 0, %v400
    %v402 = vrot.slane %v289, %v401
    %v403 = vlaneseq
    %v404 = vshrl.u32 %v403, 7
    %v405 = vsub.s32 0, %v404
    %v406 = vrot.slane %v272, %v405
    %v407 = vlaneseq
    %v408 = vshrl.u32 %v407, 7
    %v409 = vsub.s32 0, %v408
    %v410 = vrot.slane %v286, %v409
    %v411 = vlaneseq
    %v412 = vshrl.u32 %v411, 7
    %v413 = vsub.s32 0, %v412
    %v414 = vrot.slane %v288, %v413
    %v415 = vlaneseq
    %v416 = vshrl.u32 %v415, 7
    %v417 = vsub.s32 0, %v416
    %v418 = vrot.slane %v290, %v417
    %419 = vset.pattern.permute.xlu0 0
    %420 = vperm.xlu0 %419, %v294
    %v421 = vpop.permute.xlu0 %420
    %423 = vset.pattern.permute.xlu0 0
    %424 = vperm.xlu0 %423, %v298
    %v425 = vpop.permute.xlu0 %424
    %427 = vset.pattern.permute.xlu0 0
    %428 = vperm.xlu0 %427, %v302
    %v429 = vpop.permute.xlu0 %428
    %431 = vset.pattern.permute.xlu0 0
    %432 = vperm.xlu0 %431, %v306
    %v433 = vpop.permute.xlu0 %432
    %435 = vset.pattern.permute.xlu0 0
    %436 = vperm.xlu0 %435, %v310
    %v437 = vpop.permute.xlu0 %436
    %439 = vset.pattern.permute.xlu0 0
    %440 = vperm.xlu0 %439, %v314
    %v441 = vpop.permute.xlu0 %440
    %443 = vset.pattern.permute.xlu0 0
    %444 = vperm.xlu0 %443, %v318
    %v445 = vpop.permute.xlu0 %444
    %447 = vset.pattern.permute.xlu0 0
    %448 = vperm.xlu0 %447, %v322
    %v449 = vpop.permute.xlu0 %448
    %451 = vset.pattern.permute.xlu0 0
    %452 = vperm.xlu0 %451, %v326
    %v453 = vpop.permute.xlu0 %452
    %455 = vset.pattern.permute.xlu0 0
    %456 = vperm.xlu0 %455, %v330
    %v457 = vpop.permute.xlu0 %456
    %459 = vset.pattern.permute.xlu0 0
    %460 = vperm.xlu0 %459, %v334
    %v461 = vpop.permute.xlu0 %460
    %463 = vset.pattern.permute.xlu0 0
    %464 = vperm.xlu0 %463, %v338
    %v465 = vpop.permute.xlu0 %464
    %467 = vset.pattern.permute.xlu0 0
    %468 = vperm.xlu0 %467, %v342
    %v469 = vpop.permute.xlu0 %468
    %471 = vset.pattern.permute.xlu0 0
    %472 = vperm.xlu0 %471, %v346
    %v473 = vpop.permute.xlu0 %472
    %475 = vset.pattern.permute.xlu0 0
    %476 = vperm.xlu0 %475, %v350
    %v477 = vpop.permute.xlu0 %476
    %479 = vset.pattern.permute.xlu0 0
    %480 = vperm.xlu0 %479, %v354
    %v481 = vpop.permute.xlu0 %480
    %483 = vset.pattern.permute.xlu0 0
    %484 = vperm.xlu0 %483, %v358
    %v485 = vpop.permute.xlu0 %484
    %487 = vset.pattern.permute.xlu0 0
    %488 = vperm.xlu0 %487, %v362
    %v489 = vpop.permute.xlu0 %488
    %491 = vset.pattern.permute.xlu0 0
    %492 = vperm.xlu0 %491, %v366
    %v493 = vpop.permute.xlu0 %492
    %495 = vset.pattern.permute.xlu0 0
    %496 = vperm.xlu0 %495, %v370
    %v497 = vpop.permute.xlu0 %496
    %499 = vset.pattern.permute.xlu0 0
    %500 = vperm.xlu0 %499, %v374
    %v501 = vpop.permute.xlu0 %500
    %503 = vset.pattern.permute.xlu0 0
    %504 = vperm.xlu0 %503, %v378
    %v505 = vpop.permute.xlu0 %504
    %507 = vset.pattern.permute.xlu0 0
    %508 = vperm.xlu0 %507, %v382
    %v509 = vpop.permute.xlu0 %508
    %511 = vset.pattern.permute.xlu0 0
    %512 = vperm.xlu0 %511, %v386
    %v513 = vpop.permute.xlu0 %512
    %515 = vset.pattern.permute.xlu0 0
    %516 = vperm.xlu0 %515, %v390
    %v517 = vpop.permute.xlu0 %516
    %519 = vset.pattern.permute.xlu0 0
    %520 = vperm.xlu0 %519, %v394
    %v521 = vpop.permute.xlu0 %520
    %523 = vset.pattern.permute.xlu0 0
    %524 = vperm.xlu0 %523, %v398
    %v525 = vpop.permute.xlu0 %524
    %527 = vset.pattern.permute.xlu0 0
    %528 = vperm.xlu0 %527, %v402
    %v529 = vpop.permute.xlu0 %528
    %531 = vset.pattern.permute.xlu0 0
    %532 = vperm.xlu0 %531, %v406
    %v533 = vpop.permute.xlu0 %532
    %535 = vset.pattern.permute.xlu0 0
    %536 = vperm.xlu0 %535, %v410
    %v537 = vpop.permute.xlu0 %536
    %539 = vset.pattern.permute.xlu0 0
    %540 = vperm.xlu0 %539, %v414
    %v541 = vpop.permute.xlu0 %540
    %543 = vset.pattern.permute.xlu0 0
    %544 = vperm.xlu0 %543, %v418
    %v545 = vpop.permute.xlu0 %544
    %v547 = vmul.f32 %v421, %v35
    %v548 = vmul.f32 %v425, %v35
    %v549 = vmul.f32 %v429, %v35
    %v550 = vmul.f32 %v433, %v35
    %v551 = vmul.f32 %v437, %v35
    %v552 = vmul.f32 %v441, %v35
    %v553 = vmul.f32 %v445, %v35
    %v554 = vmul.f32 %v449, %v35
    %v555 = vmul.f32 %v453, %v35
    %v556 = vmul.f32 %v457, %v35
    %v557 = vmul.f32 %v461, %v35
    %v558 = vmul.f32 %v465, %v35
    %v559 = vmul.f32 %v469, %v35
    %v560 = vmul.f32 %v473, %v35
    %v561 = vmul.f32 %v477, %v35
    %v562 = vmul.f32 %v481, %v35
    %v563 = vmul.f32 %v485, %v35
    %v564 = vmul.f32 %v489, %v35
    %v565 = vmul.f32 %v493, %v35
    %v566 = vmul.f32 %v497, %v35
    %v567 = vmul.f32 %v501, %v35
    %v568 = vmul.f32 %v505, %v35
    %v569 = vmul.f32 %v509, %v35
    %v570 = vmul.f32 %v513, %v35
    %v571 = vmul.f32 %v517, %v35
    %v572 = vmul.f32 %v521, %v35
    %v573 = vmul.f32 %v525, %v35
    %v574 = vmul.f32 %v529, %v35
    %v575 = vmul.f32 %v533, %v35
    %v576 = vmul.f32 %v537, %v35
    %v577 = vmul.f32 %v541, %v35
    %v578 = vmul.f32 %v545, %v35
    %579 = vset.pattern.permute.xlu0 1
    %580 = vperm.xlu0 %579, %v294
    %v581 = vpop.permute.xlu0 %580
    %583 = vset.pattern.permute.xlu0 1
    %584 = vperm.xlu0 %583, %v298
    %v585 = vpop.permute.xlu0 %584
    %587 = vset.pattern.permute.xlu0 1
    %588 = vperm.xlu0 %587, %v302
    %v589 = vpop.permute.xlu0 %588
    %591 = vset.pattern.permute.xlu0 1
    %592 = vperm.xlu0 %591, %v306
    %v593 = vpop.permute.xlu0 %592
    %595 = vset.pattern.permute.xlu0 1
    %596 = vperm.xlu0 %595, %v310
    %v597 = vpop.permute.xlu0 %596
    %599 = vset.pattern.permute.xlu0 1
    %600 = vperm.xlu0 %599, %v314
    %v601 = vpop.permute.xlu0 %600
    %603 = vset.pattern.permute.xlu0 1
    %604 = vperm.xlu0 %603, %v318
    %v605 = vpop.permute.xlu0 %604
    %607 = vset.pattern.permute.xlu0 1
    %608 = vperm.xlu0 %607, %v322
    %v609 = vpop.permute.xlu0 %608
    %611 = vset.pattern.permute.xlu0 1
    %612 = vperm.xlu0 %611, %v326
    %v613 = vpop.permute.xlu0 %612
    %615 = vset.pattern.permute.xlu0 1
    %616 = vperm.xlu0 %615, %v330
    %v617 = vpop.permute.xlu0 %616
    %619 = vset.pattern.permute.xlu0 1
    %620 = vperm.xlu0 %619, %v334
    %v621 = vpop.permute.xlu0 %620
    %623 = vset.pattern.permute.xlu0 1
    %624 = vperm.xlu0 %623, %v338
    %v625 = vpop.permute.xlu0 %624
    %627 = vset.pattern.permute.xlu0 1
    %628 = vperm.xlu0 %627, %v342
    %v629 = vpop.permute.xlu0 %628
    %631 = vset.pattern.permute.xlu0 1
    %632 = vperm.xlu0 %631, %v346
    %v633 = vpop.permute.xlu0 %632
    %635 = vset.pattern.permute.xlu0 1
    %636 = vperm.xlu0 %635, %v350
    %v637 = vpop.permute.xlu0 %636
    %639 = vset.pattern.permute.xlu0 1
    %640 = vperm.xlu0 %639, %v354
    %v641 = vpop.permute.xlu0 %640
    %643 = vset.pattern.permute.xlu0 1
    %644 = vperm.xlu0 %643, %v358
    %v645 = vpop.permute.xlu0 %644
    %647 = vset.pattern.permute.xlu0 1
    %648 = vperm.xlu0 %647, %v362
    %v649 = vpop.permute.xlu0 %648
    %651 = vset.pattern.permute.xlu0 1
    %652 = vperm.xlu0 %651, %v366
    %v653 = vpop.permute.xlu0 %652
    %655 = vset.pattern.permute.xlu0 1
    %656 = vperm.xlu0 %655, %v370
    %v657 = vpop.permute.xlu0 %656
    %659 = vset.pattern.permute.xlu0 1
    %660 = vperm.xlu0 %659, %v374
    %v661 = vpop.permute.xlu0 %660
    %663 = vset.pattern.permute.xlu0 1
    %664 = vperm.xlu0 %663, %v378
    %v665 = vpop.permute.xlu0 %664
    %667 = vset.pattern.permute.xlu0 1
    %668 = vperm.xlu0 %667, %v382
    %v669 = vpop.permute.xlu0 %668
    %671 = vset.pattern.permute.xlu0 1
    %672 = vperm.xlu0 %671, %v386
    %v673 = vpop.permute.xlu0 %672
    %675 = vset.pattern.permute.xlu0 1
    %676 = vperm.xlu0 %675, %v390
    %v677 = vpop.permute.xlu0 %676
    %679 = vset.pattern.permute.xlu0 1
    %680 = vperm.xlu0 %679, %v394
    %v681 = vpop.permute.xlu0 %680
    %683 = vset.pattern.permute.xlu0 1
    %684 = vperm.xlu0 %683, %v398
    %v685 = vpop.permute.xlu0 %684
    %687 = vset.pattern.permute.xlu0 1
    %688 = vperm.xlu0 %687, %v402
    %v689 = vpop.permute.xlu0 %688
    %691 = vset.pattern.permute.xlu0 1
    %692 = vperm.xlu0 %691, %v406
    %v693 = vpop.permute.xlu0 %692
    %695 = vset.pattern.permute.xlu0 1
    %696 = vperm.xlu0 %695, %v410
    %v697 = vpop.permute.xlu0 %696
    %699 = vset.pattern.permute.xlu0 1
    %700 = vperm.xlu0 %699, %v414
    %v701 = vpop.permute.xlu0 %700
    %703 = vset.pattern.permute.xlu0 1
    %704 = vperm.xlu0 %703, %v418
    %v705 = vpop.permute.xlu0 %704
    %v707 = vmul.f32 %v581, %v82
    %v708 = vmul.f32 %v585, %v82
    %v709 = vmul.f32 %v589, %v82
    %v710 = vmul.f32 %v593, %v82
    %v711 = vmul.f32 %v597, %v82
    %v712 = vmul.f32 %v601, %v82
    %v713 = vmul.f32 %v605, %v82
    %v714 = vmul.f32 %v609, %v82
    %v715 = vmul.f32 %v613, %v82
    %v716 = vmul.f32 %v617, %v82
    %v717 = vmul.f32 %v621, %v82
    %v718 = vmul.f32 %v625, %v82
    %v719 = vmul.f32 %v629, %v82
    %v720 = vmul.f32 %v633, %v82
    %v721 = vmul.f32 %v637, %v82
    %v722 = vmul.f32 %v641, %v82
    %v723 = vmul.f32 %v645, %v82
    %v724 = vmul.f32 %v649, %v82
    %v725 = vmul.f32 %v653, %v82
    %v726 = vmul.f32 %v657, %v82
    %v727 = vmul.f32 %v661, %v82
    %v728 = vmul.f32 %v665, %v82
    %v729 = vmul.f32 %v669, %v82
    %v730 = vmul.f32 %v673, %v82
    %v731 = vmul.f32 %v677, %v82
    %v732 = vmul.f32 %v681, %v82
    %v733 = vmul.f32 %v685, %v82
    %v734 = vmul.f32 %v689, %v82
    %v735 = vmul.f32 %v693, %v82
    %v736 = vmul.f32 %v697, %v82
    %v737 = vmul.f32 %v701, %v82
    %v738 = vmul.f32 %v705, %v82
    %v739 = vadd.f32 %v547, %v707
    %v740 = vadd.f32 %v548, %v708
    %v741 = vadd.f32 %v549, %v709
    %v742 = vadd.f32 %v550, %v710
    %v743 = vadd.f32 %v551, %v711
    %v744 = vadd.f32 %v552, %v712
    %v745 = vadd.f32 %v553, %v713
    %v746 = vadd.f32 %v554, %v714
    %v747 = vadd.f32 %v555, %v715
    %v748 = vadd.f32 %v556, %v716
    %v749 = vadd.f32 %v557, %v717
    %v750 = vadd.f32 %v558, %v718
    %v751 = vadd.f32 %v559, %v719
    %v752 = vadd.f32 %v560, %v720
    %v753 = vadd.f32 %v561, %v721
    %v754 = vadd.f32 %v562, %v722
    %v755 = vadd.f32 %v563, %v723
    %v756 = vadd.f32 %v564, %v724
    %v757 = vadd.f32 %v565, %v725
    %v758 = vadd.f32 %v566, %v726
    %v759 = vadd.f32 %v567, %v727
    %v760 = vadd.f32 %v568, %v728
    %v761 = vadd.f32 %v569, %v729
    %v762 = vadd.f32 %v570, %v730
    %v763 = vadd.f32 %v571, %v731
    %v764 = vadd.f32 %v572, %v732
    %v765 = vadd.f32 %v573, %v733
    %v766 = vadd.f32 %v574, %v734
    %v767 = vadd.f32 %v575, %v735
    %v768 = vadd.f32 %v576, %v736
    %v769 = vadd.f32 %v577, %v737
    %v770 = vadd.f32 %v578, %v738
    %v775 = vcombine.high %v87, %v87
    %v777 = vunpack.c.l.s4 1966171168
    %v778 = vunpack.c.0.s8 %v777
    %v779 = vlaneseq
    %v780 = vshrl.u32 %v779, 7
    %v781 = vsub.s32 %v778, %v780
    %v782 = vrot.slane %v87, %v781
    %v784 = vunpack.c.l.s4 1966171168
    %v785 = vunpack.c.0.s8 %v784
    %v786 = vlaneseq
    %v787 = vshrl.u32 %v786, 7
    %v788 = vsub.s32 %v785, %v787
    %v789 = vrot.slane %v775, %v788
    %v790 = vcombine.high %v782, %v782
    %v791 = vcombine.high %v789, %v789
    %v793 = vunpack.c.l.s4 1966171168
    %v794 = vunpack.c.0.s8 %v793
    %v795 = vlaneseq
    %v796 = vshrl.u32 %v795, 7
    %v797 = vsub.s32 %v794, %v796
    %v798 = vrot.slane %v782, %v797
    %v800 = vunpack.c.l.s4 1966171168
    %v801 = vunpack.c.0.s8 %v800
    %v802 = vlaneseq
    %v803 = vshrl.u32 %v802, 7
    %v804 = vsub.s32 %v801, %v803
    %v805 = vrot.slane %v789, %v804
    %v807 = vunpack.c.l.s4 1966171168
    %v808 = vunpack.c.0.s8 %v807
    %v809 = vlaneseq
    %v810 = vshrl.u32 %v809, 7
    %v811 = vsub.s32 %v808, %v810
    %v812 = vrot.slane %v790, %v811
    %v814 = vunpack.c.l.s4 1966171168
    %v815 = vunpack.c.0.s8 %v814
    %v816 = vlaneseq
    %v817 = vshrl.u32 %v816, 7
    %v818 = vsub.s32 %v815, %v817
    %v819 = vrot.slane %v791, %v818
    %v820 = vcombine.high %v798, %v798
    %v821 = vcombine.high %v805, %v805
    %v822 = vcombine.high %v812, %v812
    %v823 = vcombine.high %v819, %v819
    %v824 = vcombine.high %v88, %v88
    %v826 = vunpack.c.l.s4 1966171168
    %v827 = vunpack.c.0.s8 %v826
    %v828 = vlaneseq
    %v829 = vshrl.u32 %v828, 7
    %v830 = vsub.s32 %v827, %v829
    %v831 = vrot.slane %v88, %v830
    %v833 = vunpack.c.l.s4 1966171168
    %v834 = vunpack.c.0.s8 %v833
    %v835 = vlaneseq
    %v836 = vshrl.u32 %v835, 7
    %v837 = vsub.s32 %v834, %v836
    %v838 = vrot.slane %v824, %v837
    %v839 = vcombine.high %v831, %v831
    %v840 = vcombine.high %v838, %v838
    %v842 = vunpack.c.l.s4 1966171168
    %v843 = vunpack.c.0.s8 %v842
    %v844 = vlaneseq
    %v845 = vshrl.u32 %v844, 7
    %v846 = vsub.s32 %v843, %v845
    %v847 = vrot.slane %v831, %v846
    %v849 = vunpack.c.l.s4 1966171168
    %v850 = vunpack.c.0.s8 %v849
    %v851 = vlaneseq
    %v852 = vshrl.u32 %v851, 7
    %v853 = vsub.s32 %v850, %v852
    %v854 = vrot.slane %v838, %v853
    %v856 = vunpack.c.l.s4 1966171168
    %v857 = vunpack.c.0.s8 %v856
    %v858 = vlaneseq
    %v859 = vshrl.u32 %v858, 7
    %v860 = vsub.s32 %v857, %v859
    %v861 = vrot.slane %v839, %v860
    %v863 = vunpack.c.l.s4 1966171168
    %v864 = vunpack.c.0.s8 %v863
    %v865 = vlaneseq
    %v866 = vshrl.u32 %v865, 7
    %v867 = vsub.s32 %v864, %v866
    %v868 = vrot.slane %v840, %v867
    %v869 = vcombine.high %v847, %v847
    %v870 = vcombine.high %v854, %v854
    %v871 = vcombine.high %v861, %v861
    %v872 = vcombine.high %v868, %v868
    %v873 = vcombine.high %v89, %v89
    %v875 = vunpack.c.l.s4 1966171168
    %v876 = vunpack.c.0.s8 %v875
    %v877 = vlaneseq
    %v878 = vshrl.u32 %v877, 7
    %v879 = vsub.s32 %v876, %v878
    %v880 = vrot.slane %v89, %v879
    %v882 = vunpack.c.l.s4 1966171168
    %v883 = vunpack.c.0.s8 %v882
    %v884 = vlaneseq
    %v885 = vshrl.u32 %v884, 7
    %v886 = vsub.s32 %v883, %v885
    %v887 = vrot.slane %v873, %v886
    %v888 = vcombine.high %v880, %v880
    %v889 = vcombine.high %v887, %v887
    %v891 = vunpack.c.l.s4 1966171168
    %v892 = vunpack.c.0.s8 %v891
    %v893 = vlaneseq
    %v894 = vshrl.u32 %v893, 7
    %v895 = vsub.s32 %v892, %v894
    %v896 = vrot.slane %v880, %v895
    %v898 = vunpack.c.l.s4 1966171168
    %v899 = vunpack.c.0.s8 %v898
    %v900 = vlaneseq
    %v901 = vshrl.u32 %v900, 7
    %v902 = vsub.s32 %v899, %v901
    %v903 = vrot.slane %v887, %v902
    %v905 = vunpack.c.l.s4 1966171168
    %v906 = vunpack.c.0.s8 %v905
    %v907 = vlaneseq
    %v908 = vshrl.u32 %v907, 7
    %v909 = vsub.s32 %v906, %v908
    %v910 = vrot.slane %v888, %v909
    %v912 = vunpack.c.l.s4 1966171168
    %v913 = vunpack.c.0.s8 %v912
    %v914 = vlaneseq
    %v915 = vshrl.u32 %v914, 7
    %v916 = vsub.s32 %v913, %v915
    %v917 = vrot.slane %v889, %v916
    %v918 = vcombine.high %v896, %v896
    %v919 = vcombine.high %v903, %v903
    %v920 = vcombine.high %v910, %v910
    %v921 = vcombine.high %v917, %v917
    %v922 = vcombine.high %v90, %v90
    %v924 = vunpack.c.l.s4 1966171168
    %v925 = vunpack.c.0.s8 %v924
    %v926 = vlaneseq
    %v927 = vshrl.u32 %v926, 7
    %v928 = vsub.s32 %v925, %v927
    %v929 = vrot.slane %v90, %v928
    %v931 = vunpack.c.l.s4 1966171168
    %v932 = vunpack.c.0.s8 %v931
    %v933 = vlaneseq
    %v934 = vshrl.u32 %v933, 7
    %v935 = vsub.s32 %v932, %v934
    %v936 = vrot.slane %v922, %v935
    %v937 = vcombine.high %v929, %v929
    %v938 = vcombine.high %v936, %v936
    %v940 = vunpack.c.l.s4 1966171168
    %v941 = vunpack.c.0.s8 %v940
    %v942 = vlaneseq
    %v943 = vshrl.u32 %v942, 7
    %v944 = vsub.s32 %v941, %v943
    %v945 = vrot.slane %v929, %v944
    %v947 = vunpack.c.l.s4 1966171168
    %v948 = vunpack.c.0.s8 %v947
    %v949 = vlaneseq
    %v950 = vshrl.u32 %v949, 7
    %v951 = vsub.s32 %v948, %v950
    %v952 = vrot.slane %v936, %v951
    %v954 = vunpack.c.l.s4 1966171168
    %v955 = vunpack.c.0.s8 %v954
    %v956 = vlaneseq
    %v957 = vshrl.u32 %v956, 7
    %v958 = vsub.s32 %v955, %v957
    %v959 = vrot.slane %v937, %v958
    %v961 = vunpack.c.l.s4 1966171168
    %v962 = vunpack.c.0.s8 %v961
    %v963 = vlaneseq
    %v964 = vshrl.u32 %v963, 7
    %v965 = vsub.s32 %v962, %v964
    %v966 = vrot.slane %v938, %v965
    %v967 = vcombine.high %v945, %v945
    %v968 = vcombine.high %v952, %v952
    %v969 = vcombine.high %v959, %v959
    %v970 = vcombine.high %v966, %v966
    %v971 = vlaneseq
    %v972 = vshrl.u32 %v971, 7
    %v973 = vsub.s32 0, %v972
    %v974 = vrot.slane %v798, %v973
    %v975 = vlaneseq
    %v976 = vshrl.u32 %v975, 7
    %v977 = vsub.s32 0, %v976
    %v978 = vrot.slane %v812, %v977
    %v979 = vlaneseq
    %v980 = vshrl.u32 %v979, 7
    %v981 = vsub.s32 0, %v980
    %v982 = vrot.slane %v820, %v981
    %v983 = vlaneseq
    %v984 = vshrl.u32 %v983, 7
    %v985 = vsub.s32 0, %v984
    %v986 = vrot.slane %v822, %v985
    %v987 = vlaneseq
    %v988 = vshrl.u32 %v987, 7
    %v989 = vsub.s32 0, %v988
    %v990 = vrot.slane %v805, %v989
    %v991 = vlaneseq
    %v992 = vshrl.u32 %v991, 7
    %v993 = vsub.s32 0, %v992
    %v994 = vrot.slane %v819, %v993
    %v995 = vlaneseq
    %v996 = vshrl.u32 %v995, 7
    %v997 = vsub.s32 0, %v996
    %v998 = vrot.slane %v821, %v997
    %v999 = vlaneseq
    %v1000 = vshrl.u32 %v999, 7
    %v1001 = vsub.s32 0, %v1000
    %v1002 = vrot.slane %v823, %v1001
    %v1003 = vlaneseq
    %v1004 = vshrl.u32 %v1003, 7
    %v1005 = vsub.s32 0, %v1004
    %v1006 = vrot.slane %v847, %v1005
    %v1007 = vlaneseq
    %v1008 = vshrl.u32 %v1007, 7
    %v1009 = vsub.s32 0, %v1008
    %v1010 = vrot.slane %v861, %v1009
    %v1011 = vlaneseq
    %v1012 = vshrl.u32 %v1011, 7
    %v1013 = vsub.s32 0, %v1012
    %v1014 = vrot.slane %v869, %v1013
    %v1015 = vlaneseq
    %v1016 = vshrl.u32 %v1015, 7
    %v1017 = vsub.s32 0, %v1016
    %v1018 = vrot.slane %v871, %v1017
    %v1019 = vlaneseq
    %v1020 = vshrl.u32 %v1019, 7
    %v1021 = vsub.s32 0, %v1020
    %v1022 = vrot.slane %v854, %v1021
    %v1023 = vlaneseq
    %v1024 = vshrl.u32 %v1023, 7
    %v1025 = vsub.s32 0, %v1024
    %v1026 = vrot.slane %v868, %v1025
    %v1027 = vlaneseq
    %v1028 = vshrl.u32 %v1027, 7
    %v1029 = vsub.s32 0, %v1028
    %v1030 = vrot.slane %v870, %v1029
    %v1031 = vlaneseq
    %v1032 = vshrl.u32 %v1031, 7
    %v1033 = vsub.s32 0, %v1032
    %v1034 = vrot.slane %v872, %v1033
    %v1035 = vlaneseq
    %v1036 = vshrl.u32 %v1035, 7
    %v1037 = vsub.s32 0, %v1036
    %v1038 = vrot.slane %v896, %v1037
    %v1039 = vlaneseq
    %v1040 = vshrl.u32 %v1039, 7
    %v1041 = vsub.s32 0, %v1040
    %v1042 = vrot.slane %v910, %v1041
    %v1043 = vlaneseq
    %v1044 = vshrl.u32 %v1043, 7
    %v1045 = vsub.s32 0, %v1044
    %v1046 = vrot.slane %v918, %v1045
    %v1047 = vlaneseq
    %v1048 = vshrl.u32 %v1047, 7
    %v1049 = vsub.s32 0, %v1048
    %v1050 = vrot.slane %v920, %v1049
    %v1051 = vlaneseq
    %v1052 = vshrl.u32 %v1051, 7
    %v1053 = vsub.s32 0, %v1052
    %v1054 = vrot.slane %v903, %v1053
    %v1055 = vlaneseq
    %v1056 = vshrl.u32 %v1055, 7
    %v1057 = vsub.s32 0, %v1056
    %v1058 = vrot.slane %v917, %v1057
    %v1059 = vlaneseq
    %v1060 = vshrl.u32 %v1059, 7
    %v1061 = vsub.s32 0, %v1060
    %v1062 = vrot.slane %v919, %v1061
    %v1063 = vlaneseq
    %v1064 = vshrl.u32 %v1063, 7
    %v1065 = vsub.s32 0, %v1064
    %v1066 = vrot.slane %v921, %v1065
    %v1067 = vlaneseq
    %v1068 = vshrl.u32 %v1067, 7
    %v1069 = vsub.s32 0, %v1068
    %v1070 = vrot.slane %v945, %v1069
    %v1071 = vlaneseq
    %v1072 = vshrl.u32 %v1071, 7
    %v1073 = vsub.s32 0, %v1072
    %v1074 = vrot.slane %v959, %v1073
    %v1075 = vlaneseq
    %v1076 = vshrl.u32 %v1075, 7
    %v1077 = vsub.s32 0, %v1076
    %v1078 = vrot.slane %v967, %v1077
    %v1079 = vlaneseq
    %v1080 = vshrl.u32 %v1079, 7
    %v1081 = vsub.s32 0, %v1080
    %v1082 = vrot.slane %v969, %v1081
    %v1083 = vlaneseq
    %v1084 = vshrl.u32 %v1083, 7
    %v1085 = vsub.s32 0, %v1084
    %v1086 = vrot.slane %v952, %v1085
    %v1087 = vlaneseq
    %v1088 = vshrl.u32 %v1087, 7
    %v1089 = vsub.s32 0, %v1088
    %v1090 = vrot.slane %v966, %v1089
    %v1091 = vlaneseq
    %v1092 = vshrl.u32 %v1091, 7
    %v1093 = vsub.s32 0, %v1092
    %v1094 = vrot.slane %v968, %v1093
    %v1095 = vlaneseq
    %v1096 = vshrl.u32 %v1095, 7
    %v1097 = vsub.s32 0, %v1096
    %v1098 = vrot.slane %v970, %v1097
    %1099 = vset.pattern.permute.xlu0 0
    %1100 = vperm.xlu0 %1099, %v974
    %v1101 = vpop.permute.xlu0 %1100
    %1103 = vset.pattern.permute.xlu0 0
    %1104 = vperm.xlu0 %1103, %v978
    %v1105 = vpop.permute.xlu0 %1104
    %1107 = vset.pattern.permute.xlu0 0
    %1108 = vperm.xlu0 %1107, %v982
    %v1109 = vpop.permute.xlu0 %1108
    %1111 = vset.pattern.permute.xlu0 0
    %1112 = vperm.xlu0 %1111, %v986
    %v1113 = vpop.permute.xlu0 %1112
    %1115 = vset.pattern.permute.xlu0 0
    %1116 = vperm.xlu0 %1115, %v990
    %v1117 = vpop.permute.xlu0 %1116
    %1119 = vset.pattern.permute.xlu0 0
    %1120 = vperm.xlu0 %1119, %v994
    %v1121 = vpop.permute.xlu0 %1120
    %1123 = vset.pattern.permute.xlu0 0
    %1124 = vperm.xlu0 %1123, %v998
    %v1125 = vpop.permute.xlu0 %1124
    %1127 = vset.pattern.permute.xlu0 0
    %1128 = vperm.xlu0 %1127, %v1002
    %v1129 = vpop.permute.xlu0 %1128
    %1131 = vset.pattern.permute.xlu0 0
    %1132 = vperm.xlu0 %1131, %v1006
    %v1133 = vpop.permute.xlu0 %1132
    %1135 = vset.pattern.permute.xlu0 0
    %1136 = vperm.xlu0 %1135, %v1010
    %v1137 = vpop.permute.xlu0 %1136
    %1139 = vset.pattern.permute.xlu0 0
    %1140 = vperm.xlu0 %1139, %v1014
    %v1141 = vpop.permute.xlu0 %1140
    %1143 = vset.pattern.permute.xlu0 0
    %1144 = vperm.xlu0 %1143, %v1018
    %v1145 = vpop.permute.xlu0 %1144
    %1147 = vset.pattern.permute.xlu0 0
    %1148 = vperm.xlu0 %1147, %v1022
    %v1149 = vpop.permute.xlu0 %1148
    %1151 = vset.pattern.permute.xlu0 0
    %1152 = vperm.xlu0 %1151, %v1026
    %v1153 = vpop.permute.xlu0 %1152
    %1155 = vset.pattern.permute.xlu0 0
    %1156 = vperm.xlu0 %1155, %v1030
    %v1157 = vpop.permute.xlu0 %1156
    %1159 = vset.pattern.permute.xlu0 0
    %1160 = vperm.xlu0 %1159, %v1034
    %v1161 = vpop.permute.xlu0 %1160
    %1163 = vset.pattern.permute.xlu0 0
    %1164 = vperm.xlu0 %1163, %v1038
    %v1165 = vpop.permute.xlu0 %1164
    %1167 = vset.pattern.permute.xlu0 0
    %1168 = vperm.xlu0 %1167, %v1042
    %v1169 = vpop.permute.xlu0 %1168
    %1171 = vset.pattern.permute.xlu0 0
    %1172 = vperm.xlu0 %1171, %v1046
    %v1173 = vpop.permute.xlu0 %1172
    %1175 = vset.pattern.permute.xlu0 0
    %1176 = vperm.xlu0 %1175, %v1050
    %v1177 = vpop.permute.xlu0 %1176
    %1179 = vset.pattern.permute.xlu0 0
    %1180 = vperm.xlu0 %1179, %v1054
    %v1181 = vpop.permute.xlu0 %1180
    %1183 = vset.pattern.permute.xlu0 0
    %1184 = vperm.xlu0 %1183, %v1058
    %v1185 = vpop.permute.xlu0 %1184
    %1187 = vset.pattern.permute.xlu0 0
    %1188 = vperm.xlu0 %1187, %v1062
    %v1189 = vpop.permute.xlu0 %1188
    %1191 = vset.pattern.permute.xlu0 0
    %1192 = vperm.xlu0 %1191, %v1066
    %v1193 = vpop.permute.xlu0 %1192
    %1195 = vset.pattern.permute.xlu0 0
    %1196 = vperm.xlu0 %1195, %v1070
    %v1197 = vpop.permute.xlu0 %1196
    %1199 = vset.pattern.permute.xlu0 0
    %1200 = vperm.xlu0 %1199, %v1074
    %v1201 = vpop.permute.xlu0 %1200
    %1203 = vset.pattern.permute.xlu0 0
    %1204 = vperm.xlu0 %1203, %v1078
    %v1205 = vpop.permute.xlu0 %1204
    %1207 = vset.pattern.permute.xlu0 0
    %1208 = vperm.xlu0 %1207, %v1082
    %v1209 = vpop.permute.xlu0 %1208
    %1211 = vset.pattern.permute.xlu0 0
    %1212 = vperm.xlu0 %1211, %v1086
    %v1213 = vpop.permute.xlu0 %1212
    %1215 = vset.pattern.permute.xlu0 0
    %1216 = vperm.xlu0 %1215, %v1090
    %v1217 = vpop.permute.xlu0 %1216
    %1219 = vset.pattern.permute.xlu0 0
    %1220 = vperm.xlu0 %1219, %v1094
    %v1221 = vpop.permute.xlu0 %1220
    %1223 = vset.pattern.permute.xlu0 0
    %1224 = vperm.xlu0 %1223, %v1098
    %v1225 = vpop.permute.xlu0 %1224
    %v1227 = vadd.f32 %v739, %v1101
    %v1228 = vadd.f32 %v740, %v1105
    %v1229 = vadd.f32 %v741, %v1109
    %v1230 = vadd.f32 %v742, %v1113
    %v1231 = vadd.f32 %v743, %v1117
    %v1232 = vadd.f32 %v744, %v1121
    %v1233 = vadd.f32 %v745, %v1125
    %v1234 = vadd.f32 %v746, %v1129
    %v1235 = vadd.f32 %v747, %v1133
    %v1236 = vadd.f32 %v748, %v1137
    %v1237 = vadd.f32 %v749, %v1141
    %v1238 = vadd.f32 %v750, %v1145
    %v1239 = vadd.f32 %v751, %v1149
    %v1240 = vadd.f32 %v752, %v1153
    %v1241 = vadd.f32 %v753, %v1157
    %v1242 = vadd.f32 %v754, %v1161
    %v1243 = vadd.f32 %v755, %v1165
    %v1244 = vadd.f32 %v756, %v1169
    %v1245 = vadd.f32 %v757, %v1173
    %v1246 = vadd.f32 %v758, %v1177
    %v1247 = vadd.f32 %v759, %v1181
    %v1248 = vadd.f32 %v760, %v1185
    %v1249 = vadd.f32 %v761, %v1189
    %v1250 = vadd.f32 %v762, %v1193
    %v1251 = vadd.f32 %v763, %v1197
    %v1252 = vadd.f32 %v764, %v1201
    %v1253 = vadd.f32 %v765, %v1205
    %v1254 = vadd.f32 %v766, %v1209
    %v1255 = vadd.f32 %v767, %v1213
    %v1256 = vadd.f32 %v768, %v1217
    %v1257 = vadd.f32 %v769, %v1221
    %v1258 = vadd.f32 %v770, %v1225
    %v1259 = vtanh.pop %v1227
    %v1260 = vtanh.pop %v1228
    %v1261 = vtanh.pop %v1229
    %v1262 = vtanh.pop %v1230
    %v1263 = vtanh.pop %v1231
    %v1264 = vtanh.pop %v1232
    %v1265 = vtanh.pop %v1233
    %v1266 = vtanh.pop %v1234
    %v1267 = vtanh.pop %v1235
    %v1268 = vtanh.pop %v1236
    %v1269 = vtanh.pop %v1237
    %v1270 = vtanh.pop %v1238
    %v1271 = vtanh.pop %v1239
    %v1272 = vtanh.pop %v1240
    %v1273 = vtanh.pop %v1241
    %v1274 = vtanh.pop %v1242
    %v1275 = vtanh.pop %v1243
    %v1276 = vtanh.pop %v1244
    %v1277 = vtanh.pop %v1245
    %v1278 = vtanh.pop %v1246
    %v1279 = vtanh.pop %v1247
    %v1280 = vtanh.pop %v1248
    %v1281 = vtanh.pop %v1249
    %v1282 = vtanh.pop %v1250
    %v1283 = vtanh.pop %v1251
    %v1284 = vtanh.pop %v1252
    %v1285 = vtanh.pop %v1253
    %v1286 = vtanh.pop %v1254
    %v1287 = vtanh.pop %v1255
    %v1288 = vtanh.pop %v1256
    %v1289 = vtanh.pop %v1257
    %v1290 = vtanh.pop %v1258
    %v1291 = vld [vmem:[%s3] sm:$0xff]
    %v1292 = vld [vmem:[%s3 + $0x8] sm:$0xff]
    %v1293 = vld [vmem:[%s3 + $0x10] sm:$0xff]
    %v1294 = vld [vmem:[%s3 + $0x18] sm:$0xff]
    %v1299 = vcombine.high %v1291, %v1291
    %v1301 = vunpack.c.l.s4 1966171168
    %v1302 = vunpack.c.0.s8 %v1301
    %v1303 = vlaneseq
    %v1304 = vshrl.u32 %v1303, 7
    %v1305 = vsub.s32 %v1302, %v1304
    %v1306 = vrot.slane %v1291, %v1305
    %v1308 = vunpack.c.l.s4 1966171168
    %v1309 = vunpack.c.0.s8 %v1308
    %v1310 = vlaneseq
    %v1311 = vshrl.u32 %v1310, 7
    %v1312 = vsub.s32 %v1309, %v1311
    %v1313 = vrot.slane %v1299, %v1312
    %v1314 = vcombine.high %v1306, %v1306
    %v1315 = vcombine.high %v1313, %v1313
    %v1317 = vunpack.c.l.s4 1966171168
    %v1318 = vunpack.c.0.s8 %v1317
    %v1319 = vlaneseq
    %v1320 = vshrl.u32 %v1319, 7
    %v1321 = vsub.s32 %v1318, %v1320
    %v1322 = vrot.slane %v1306, %v1321
    %v1324 = vunpack.c.l.s4 1966171168
    %v1325 = vunpack.c.0.s8 %v1324
    %v1326 = vlaneseq
    %v1327 = vshrl.u32 %v1326, 7
    %v1328 = vsub.s32 %v1325, %v1327
    %v1329 = vrot.slane %v1313, %v1328
    %v1331 = vunpack.c.l.s4 1966171168
    %v1332 = vunpack.c.0.s8 %v1331
    %v1333 = vlaneseq
    %v1334 = vshrl.u32 %v1333, 7
    %v1335 = vsub.s32 %v1332, %v1334
    %v1336 = vrot.slane %v1314, %v1335
    %v1338 = vunpack.c.l.s4 1966171168
    %v1339 = vunpack.c.0.s8 %v1338
    %v1340 = vlaneseq
    %v1341 = vshrl.u32 %v1340, 7
    %v1342 = vsub.s32 %v1339, %v1341
    %v1343 = vrot.slane %v1315, %v1342
    %v1344 = vcombine.high %v1322, %v1322
    %v1345 = vcombine.high %v1329, %v1329
    %v1346 = vcombine.high %v1336, %v1336
    %v1347 = vcombine.high %v1343, %v1343
    %v1348 = vcombine.high %v1292, %v1292
    %v1350 = vunpack.c.l.s4 1966171168
    %v1351 = vunpack.c.0.s8 %v1350
    %v1352 = vlaneseq
    %v1353 = vshrl.u32 %v1352, 7
    %v1354 = vsub.s32 %v1351, %v1353
    %v1355 = vrot.slane %v1292, %v1354
    %v1357 = vunpack.c.l.s4 1966171168
    %v1358 = vunpack.c.0.s8 %v1357
    %v1359 = vlaneseq
    %v1360 = vshrl.u32 %v1359, 7
    %v1361 = vsub.s32 %v1358, %v1360
    %v1362 = vrot.slane %v1348, %v1361
    %v1363 = vcombine.high %v1355, %v1355
    %v1364 = vcombine.high %v1362, %v1362
    %v1366 = vunpack.c.l.s4 1966171168
    %v1367 = vunpack.c.0.s8 %v1366
    %v1368 = vlaneseq
    %v1369 = vshrl.u32 %v1368, 7
    %v1370 = vsub.s32 %v1367, %v1369
    %v1371 = vrot.slane %v1355, %v1370
    %v1373 = vunpack.c.l.s4 1966171168
    %v1374 = vunpack.c.0.s8 %v1373
    %v1375 = vlaneseq
    %v1376 = vshrl.u32 %v1375, 7
    %v1377 = vsub.s32 %v1374, %v1376
    %v1378 = vrot.slane %v1362, %v1377
    %v1380 = vunpack.c.l.s4 1966171168
    %v1381 = vunpack.c.0.s8 %v1380
    %v1382 = vlaneseq
    %v1383 = vshrl.u32 %v1382, 7
    %v1384 = vsub.s32 %v1381, %v1383
    %v1385 = vrot.slane %v1363, %v1384
    %v1387 = vunpack.c.l.s4 1966171168
    %v1388 = vunpack.c.0.s8 %v1387
    %v1389 = vlaneseq
    %v1390 = vshrl.u32 %v1389, 7
    %v1391 = vsub.s32 %v1388, %v1390
    %v1392 = vrot.slane %v1364, %v1391
    %v1393 = vcombine.high %v1371, %v1371
    %v1394 = vcombine.high %v1378, %v1378
    %v1395 = vcombine.high %v1385, %v1385
    %v1396 = vcombine.high %v1392, %v1392
    %v1397 = vcombine.high %v1293, %v1293
    %v1399 = vunpack.c.l.s4 1966171168
    %v1400 = vunpack.c.0.s8 %v1399
    %v1401 = vlaneseq
    %v1402 = vshrl.u32 %v1401, 7
    %v1403 = vsub.s32 %v1400, %v1402
    %v1404 = vrot.slane %v1293, %v1403
    %v1406 = vunpack.c.l.s4 1966171168
    %v1407 = vunpack.c.0.s8 %v1406
    %v1408 = vlaneseq
    %v1409 = vshrl.u32 %v1408, 7
    %v1410 = vsub.s32 %v1407, %v1409
    %v1411 = vrot.slane %v1397, %v1410
    %v1412 = vcombine.high %v1404, %v1404
    %v1413 = vcombine.high %v1411, %v1411
    %v1415 = vunpack.c.l.s4 1966171168
    %v1416 = vunpack.c.0.s8 %v1415
    %v1417 = vlaneseq
    %v1418 = vshrl.u32 %v1417, 7
    %v1419 = vsub.s32 %v1416, %v1418
    %v1420 = vrot.slane %v1404, %v1419
    %v1422 = vunpack.c.l.s4 1966171168
    %v1423 = vunpack.c.0.s8 %v1422
    %v1424 = vlaneseq
    %v1425 = vshrl.u32 %v1424, 7
    %v1426 = vsub.s32 %v1423, %v1425
    %v1427 = vrot.slane %v1411, %v1426
    %v1429 = vunpack.c.l.s4 1966171168
    %v1430 = vunpack.c.0.s8 %v1429
    %v1431 = vlaneseq
    %v1432 = vshrl.u32 %v1431, 7
    %v1433 = vsub.s32 %v1430, %v1432
    %v1434 = vrot.slane %v1412, %v1433
    %v1436 = vunpack.c.l.s4 1966171168
    %v1437 = vunpack.c.0.s8 %v1436
    %v1438 = vlaneseq
    %v1439 = vshrl.u32 %v1438, 7
    %v1440 = vsub.s32 %v1437, %v1439
    %v1441 = vrot.slane %v1413, %v1440
    %v1442 = vcombine.high %v1420, %v1420
    %v1443 = vcombine.high %v1427, %v1427
    %v1444 = vcombine.high %v1434, %v1434
    %v1445 = vcombine.high %v1441, %v1441
    %v1446 = vcombine.high %v1294, %v1294
    %v1448 = vunpack.c.l.s4 1966171168
    %v1449 = vunpack.c.0.s8 %v1448
    %v1450 = vlaneseq
    %v1451 = vshrl.u32 %v1450, 7
    %v1452 = vsub.s32 %v1449, %v1451
    %v1453 = vrot.slane %v1294, %v1452
    %v1455 = vunpack.c.l.s4 1966171168
    %v1456 = vunpack.c.0.s8 %v1455
    %v1457 = vlaneseq
    %v1458 = vshrl.u32 %v1457, 7
    %v1459 = vsub.s32 %v1456, %v1458
    %v1460 = vrot.slane %v1446, %v1459
    %v1461 = vcombine.high %v1453, %v1453
    %v1462 = vcombine.high %v1460, %v1460
    %v1464 = vunpack.c.l.s4 1966171168
    %v1465 = vunpack.c.0.s8 %v1464
    %v1466 = vlaneseq
    %v1467 = vshrl.u32 %v1466, 7
    %v1468 = vsub.s32 %v1465, %v1467
    %v1469 = vrot.slane %v1453, %v1468
    %v1471 = vunpack.c.l.s4 1966171168
    %v1472 = vunpack.c.0.s8 %v1471
    %v1473 = vlaneseq
    %v1474 = vshrl.u32 %v1473, 7
    %v1475 = vsub.s32 %v1472, %v1474
    %v1476 = vrot.slane %v1460, %v1475
    %v1478 = vunpack.c.l.s4 1966171168
    %v1479 = vunpack.c.0.s8 %v1478
    %v1480 = vlaneseq
    %v1481 = vshrl.u32 %v1480, 7
    %v1482 = vsub.s32 %v1479, %v1481
    %v1483 = vrot.slane %v1461, %v1482
    %v1485 = vunpack.c.l.s4 1966171168
    %v1486 = vunpack.c.0.s8 %v1485
    %v1487 = vlaneseq
    %v1488 = vshrl.u32 %v1487, 7
    %v1489 = vsub.s32 %v1486, %v1488
    %v1490 = vrot.slane %v1462, %v1489
    %v1491 = vcombine.high %v1469, %v1469
    %v1492 = vcombine.high %v1476, %v1476
    %v1493 = vcombine.high %v1483, %v1483
    %v1494 = vcombine.high %v1490, %v1490
    %v1495 = vlaneseq
    %v1496 = vshrl.u32 %v1495, 7
    %v1497 = vsub.s32 0, %v1496
    %v1498 = vrot.slane %v1322, %v1497
    %v1499 = vlaneseq
    %v1500 = vshrl.u32 %v1499, 7
    %v1501 = vsub.s32 0, %v1500
    %v1502 = vrot.slane %v1336, %v1501
    %v1503 = vlaneseq
    %v1504 = vshrl.u32 %v1503, 7
    %v1505 = vsub.s32 0, %v1504
    %v1506 = vrot.slane %v1344, %v1505
    %v1507 = vlaneseq
    %v1508 = vshrl.u32 %v1507, 7
    %v1509 = vsub.s32 0, %v1508
    %v1510 = vrot.slane %v1346, %v1509
    %v1511 = vlaneseq
    %v1512 = vshrl.u32 %v1511, 7
    %v1513 = vsub.s32 0, %v1512
    %v1514 = vrot.slane %v1329, %v1513
    %v1515 = vlaneseq
    %v1516 = vshrl.u32 %v1515, 7
    %v1517 = vsub.s32 0, %v1516
    %v1518 = vrot.slane %v1343, %v1517
    %v1519 = vlaneseq
    %v1520 = vshrl.u32 %v1519, 7
    %v1521 = vsub.s32 0, %v1520
    %v1522 = vrot.slane %v1345, %v1521
    %v1523 = vlaneseq
    %v1524 = vshrl.u32 %v1523, 7
    %v1525 = vsub.s32 0, %v1524
    %v1526 = vrot.slane %v1347, %v1525
    %v1527 = vlaneseq
    %v1528 = vshrl.u32 %v1527, 7
    %v1529 = vsub.s32 0, %v1528
    %v1530 = vrot.slane %v1371, %v1529
    %v1531 = vlaneseq
    %v1532 = vshrl.u32 %v1531, 7
    %v1533 = vsub.s32 0, %v1532
    %v1534 = vrot.slane %v1385, %v1533
    %v1535 = vlaneseq
    %v1536 = vshrl.u32 %v1535, 7
    %v1537 = vsub.s32 0, %v1536
    %v1538 = vrot.slane %v1393, %v1537
    %v1539 = vlaneseq
    %v1540 = vshrl.u32 %v1539, 7
    %v1541 = vsub.s32 0, %v1540
    %v1542 = vrot.slane %v1395, %v1541
    %v1543 = vlaneseq
    %v1544 = vshrl.u32 %v1543, 7
    %v1545 = vsub.s32 0, %v1544
    %v1546 = vrot.slane %v1378, %v1545
    %v1547 = vlaneseq
    %v1548 = vshrl.u32 %v1547, 7
    %v1549 = vsub.s32 0, %v1548
    %v1550 = vrot.slane %v1392, %v1549
    %v1551 = vlaneseq
    %v1552 = vshrl.u32 %v1551, 7
    %v1553 = vsub.s32 0, %v1552
    %v1554 = vrot.slane %v1394, %v1553
    %v1555 = vlaneseq
    %v1556 = vshrl.u32 %v1555, 7
    %v1557 = vsub.s32 0, %v1556
    %v1558 = vrot.slane %v1396, %v1557
    %v1559 = vlaneseq
    %v1560 = vshrl.u32 %v1559, 7
    %v1561 = vsub.s32 0, %v1560
    %v1562 = vrot.slane %v1420, %v1561
    %v1563 = vlaneseq
    %v1564 = vshrl.u32 %v1563, 7
    %v1565 = vsub.s32 0, %v1564
    %v1566 = vrot.slane %v1434, %v1565
    %v1567 = vlaneseq
    %v1568 = vshrl.u32 %v1567, 7
    %v1569 = vsub.s32 0, %v1568
    %v1570 = vrot.slane %v1442, %v1569
    %v1571 = vlaneseq
    %v1572 = vshrl.u32 %v1571, 7
    %v1573 = vsub.s32 0, %v1572
    %v1574 = vrot.slane %v1444, %v1573
    %v1575 = vlaneseq
    %v1576 = vshrl.u32 %v1575, 7
    %v1577 = vsub.s32 0, %v1576
    %v1578 = vrot.slane %v1427, %v1577
    %v1579 = vlaneseq
    %v1580 = vshrl.u32 %v1579, 7
    %v1581 = vsub.s32 0, %v1580
    %v1582 = vrot.slane %v1441, %v1581
    %v1583 = vlaneseq
    %v1584 = vshrl.u32 %v1583, 7
    %v1585 = vsub.s32 0, %v1584
    %v1586 = vrot.slane %v1443, %v1585
    %v1587 = vlaneseq
    %v1588 = vshrl.u32 %v1587, 7
    %v1589 = vsub.s32 0, %v1588
    %v1590 = vrot.slane %v1445, %v1589
    %v1591 = vlaneseq
    %v1592 = vshrl.u32 %v1591, 7
    %v1593 = vsub.s32 0, %v1592
    %v1594 = vrot.slane %v1469, %v1593
    %v1595 = vlaneseq
    %v1596 = vshrl.u32 %v1595, 7
    %v1597 = vsub.s32 0, %v1596
    %v1598 = vrot.slane %v1483, %v1597
    %v1599 = vlaneseq
    %v1600 = vshrl.u32 %v1599, 7
    %v1601 = vsub.s32 0, %v1600
    %v1602 = vrot.slane %v1491, %v1601
    %v1603 = vlaneseq
    %v1604 = vshrl.u32 %v1603, 7
    %v1605 = vsub.s32 0, %v1604
    %v1606 = vrot.slane %v1493, %v1605
    %v1607 = vlaneseq
    %v1608 = vshrl.u32 %v1607, 7
    %v1609 = vsub.s32 0, %v1608
    %v1610 = vrot.slane %v1476, %v1609
    %v1611 = vlaneseq
    %v1612 = vshrl.u32 %v1611, 7
    %v1613 = vsub.s32 0, %v1612
    %v1614 = vrot.slane %v1490, %v1613
    %v1615 = vlaneseq
    %v1616 = vshrl.u32 %v1615, 7
    %v1617 = vsub.s32 0, %v1616
    %v1618 = vrot.slane %v1492, %v1617
    %v1619 = vlaneseq
    %v1620 = vshrl.u32 %v1619, 7
    %v1621 = vsub.s32 0, %v1620
    %v1622 = vrot.slane %v1494, %v1621
    %1623 = vset.pattern.permute.xlu0 0
    %1624 = vperm.xlu0 %1623, %v1498
    %v1625 = vpop.permute.xlu0 %1624
    %1627 = vset.pattern.permute.xlu0 0
    %1628 = vperm.xlu0 %1627, %v1502
    %v1629 = vpop.permute.xlu0 %1628
    %1631 = vset.pattern.permute.xlu0 0
    %1632 = vperm.xlu0 %1631, %v1506
    %v1633 = vpop.permute.xlu0 %1632
    %1635 = vset.pattern.permute.xlu0 0
    %1636 = vperm.xlu0 %1635, %v1510
    %v1637 = vpop.permute.xlu0 %1636
    %1639 = vset.pattern.permute.xlu0 0
    %1640 = vperm.xlu0 %1639, %v1514
    %v1641 = vpop.permute.xlu0 %1640
    %1643 = vset.pattern.permute.xlu0 0
    %1644 = vperm.xlu0 %1643, %v1518
    %v1645 = vpop.permute.xlu0 %1644
    %1647 = vset.pattern.permute.xlu0 0
    %1648 = vperm.xlu0 %1647, %v1522
    %v1649 = vpop.permute.xlu0 %1648
    %1651 = vset.pattern.permute.xlu0 0
    %1652 = vperm.xlu0 %1651, %v1526
    %v1653 = vpop.permute.xlu0 %1652
    %1655 = vset.pattern.permute.xlu0 0
    %1656 = vperm.xlu0 %1655, %v1530
    %v1657 = vpop.permute.xlu0 %1656
    %1659 = vset.pattern.permute.xlu0 0
    %1660 = vperm.xlu0 %1659, %v1534
    %v1661 = vpop.permute.xlu0 %1660
    %1663 = vset.pattern.permute.xlu0 0
    %1664 = vperm.xlu0 %1663, %v1538
    %v1665 = vpop.permute.xlu0 %1664
    %1667 = vset.pattern.permute.xlu0 0
    %1668 = vperm.xlu0 %1667, %v1542
    %v1669 = vpop.permute.xlu0 %1668
    %1671 = vset.pattern.permute.xlu0 0
    %1672 = vperm.xlu0 %1671, %v1546
    %v1673 = vpop.permute.xlu0 %1672
    %1675 = vset.pattern.permute.xlu0 0
    %1676 = vperm.xlu0 %1675, %v1550
    %v1677 = vpop.permute.xlu0 %1676
    %1679 = vset.pattern.permute.xlu0 0
    %1680 = vperm.xlu0 %1679, %v1554
    %v1681 = vpop.permute.xlu0 %1680
    %1683 = vset.pattern.permute.xlu0 0
    %1684 = vperm.xlu0 %1683, %v1558
    %v1685 = vpop.permute.xlu0 %1684
    %1687 = vset.pattern.permute.xlu0 0
    %1688 = vperm.xlu0 %1687, %v1562
    %v1689 = vpop.permute.xlu0 %1688
    %1691 = vset.pattern.permute.xlu0 0
    %1692 = vperm.xlu0 %1691, %v1566
    %v1693 = vpop.permute.xlu0 %1692
    %1695 = vset.pattern.permute.xlu0 0
    %1696 = vperm.xlu0 %1695, %v1570
    %v1697 = vpop.permute.xlu0 %1696
    %1699 = vset.pattern.permute.xlu0 0
    %1700 = vperm.xlu0 %1699, %v1574
    %v1701 = vpop.permute.xlu0 %1700
    %1703 = vset.pattern.permute.xlu0 0
    %1704 = vperm.xlu0 %1703, %v1578
    %v1705 = vpop.permute.xlu0 %1704
    %1707 = vset.pattern.permute.xlu0 0
    %1708 = vperm.xlu0 %1707, %v1582
    %v1709 = vpop.permute.xlu0 %1708
    %1711 = vset.pattern.permute.xlu0 0
    %1712 = vperm.xlu0 %1711, %v1586
    %v1713 = vpop.permute.xlu0 %1712
    %1715 = vset.pattern.permute.xlu0 0
    %1716 = vperm.xlu0 %1715, %v1590
    %v1717 = vpop.permute.xlu0 %1716
    %1719 = vset.pattern.permute.xlu0 0
    %1720 = vperm.xlu0 %1719, %v1594
    %v1721 = vpop.permute.xlu0 %1720
    %1723 = vset.pattern.permute.xlu0 0
    %1724 = vperm.xlu0 %1723, %v1598
    %v1725 = vpop.permute.xlu0 %1724
    %1727 = vset.pattern.permute.xlu0 0
    %1728 = vperm.xlu0 %1727, %v1602
    %v1729 = vpop.permute.xlu0 %1728
    %1731 = vset.pattern.permute.xlu0 0
    %1732 = vperm.xlu0 %1731, %v1606
    %v1733 = vpop.permute.xlu0 %1732
    %1735 = vset.pattern.permute.xlu0 0
    %1736 = vperm.xlu0 %1735, %v1610
    %v1737 = vpop.permute.xlu0 %1736
    %1739 = vset.pattern.permute.xlu0 0
    %1740 = vperm.xlu0 %1739, %v1614
    %v1741 = vpop.permute.xlu0 %1740
    %1743 = vset.pattern.permute.xlu0 0
    %1744 = vperm.xlu0 %1743, %v1618
    %v1745 = vpop.permute.xlu0 %1744
    %1747 = vset.pattern.permute.xlu0 0
    %1748 = vperm.xlu0 %1747, %v1622
    %v1749 = vpop.permute.xlu0 %1748
    %v1751 = vmul.f32 %v1259, %v1625
    %v1752 = vmul.f32 %v1260, %v1629
    %v1753 = vmul.f32 %v1261, %v1633
    %v1754 = vmul.f32 %v1262, %v1637
    %v1755 = vmul.f32 %v1263, %v1641
    %v1756 = vmul.f32 %v1264, %v1645
    %v1757 = vmul.f32 %v1265, %v1649
    %v1758 = vmul.f32 %v1266, %v1653
    %v1759 = vmul.f32 %v1267, %v1657
    %v1760 = vmul.f32 %v1268, %v1661
    %v1761 = vmul.f32 %v1269, %v1665
    %v1762 = vmul.f32 %v1270, %v1669
    %v1763 = vmul.f32 %v1271, %v1673
    %v1764 = vmul.f32 %v1272, %v1677
    %v1765 = vmul.f32 %v1273, %v1681
    %v1766 = vmul.f32 %v1274, %v1685
    %v1767 = vmul.f32 %v1275, %v1689
    %v1768 = vmul.f32 %v1276, %v1693
    %v1769 = vmul.f32 %v1277, %v1697
    %v1770 = vmul.f32 %v1278, %v1701
    %v1771 = vmul.f32 %v1279, %v1705
    %v1772 = vmul.f32 %v1280, %v1709
    %v1773 = vmul.f32 %v1281, %v1713
    %v1774 = vmul.f32 %v1282, %v1717
    %v1775 = vmul.f32 %v1283, %v1721
    %v1776 = vmul.f32 %v1284, %v1725
    %v1777 = vmul.f32 %v1285, %v1729
    %v1778 = vmul.f32 %v1286, %v1733
    %v1779 = vmul.f32 %v1287, %v1737
    %v1780 = vmul.f32 %v1288, %v1741
    %v1781 = vmul.f32 %v1289, %v1745
    %v1782 = vmul.f32 %v1290, %v1749
    %v1783 = vadd.f32 %v1751, %v1752
    %v1784 = vadd.f32 %v1783, %v1753
    %v1785 = vadd.f32 %v1784, %v1754
    %v1786 = vadd.f32 %v1785, %v1755
    %v1787 = vadd.f32 %v1786, %v1756
    %v1788 = vadd.f32 %v1787, %v1757
    %v1789 = vadd.f32 %v1788, %v1758
    %v1790 = vadd.f32 %v1789, %v1759
    %v1791 = vadd.f32 %v1790, %v1760
    %v1792 = vadd.f32 %v1791, %v1761
    %v1793 = vadd.f32 %v1792, %v1762
    %v1794 = vadd.f32 %v1793, %v1763
    %v1795 = vadd.f32 %v1794, %v1764
    %v1796 = vadd.f32 %v1795, %v1765
    %v1797 = vadd.f32 %v1796, %v1766
    %v1798 = vadd.f32 %v1797, %v1767
    %v1799 = vadd.f32 %v1798, %v1768
    %v1800 = vadd.f32 %v1799, %v1769
    %v1801 = vadd.f32 %v1800, %v1770
    %v1802 = vadd.f32 %v1801, %v1771
    %v1803 = vadd.f32 %v1802, %v1772
    %v1804 = vadd.f32 %v1803, %v1773
    %v1805 = vadd.f32 %v1804, %v1774
    %v1806 = vadd.f32 %v1805, %v1775
    %v1807 = vadd.f32 %v1806, %v1776
    %v1808 = vadd.f32 %v1807, %v1777
    %v1809 = vadd.f32 %v1808, %v1778
    %v1810 = vadd.f32 %v1809, %v1779
    %v1811 = vadd.f32 %v1810, %v1780
    %v1812 = vadd.f32 %v1811, %v1781
    %v1813 = vadd.f32 %v1812, %v1782
    %v1814 = vld [vmem:[#allocation2] sm:$0x1]
    %v1816 = vlaneseq
    %v1817 = vshrl.u32 %v1816, 7
    %v1818 = vsub.s32 0, %v1817
    %v1819 = vrot.slane %v1814, %v1818
    %1820 = vset.pattern.permute.xlu0 0
    %1821 = vperm.xlu0 %1820, %v1819
    %v1822 = vpop.permute.xlu0 %1821
    %v1824 = vadd.f32 %v1813, %v1822
    %v1825 = vxor.u32 %v1824, 2147483648
    %v1826 = vmul.f32 %v1825, 1.442695
    %v1827 = vpow.pop %v1826
    %v1828 = vadd.f32 %v1827, 1.0
    %v1829 = vrcp.pop %v1828
    %v1830 = vmul.f32 1.0, %v1829
    %1831 = vst [vmem:[#allocation3] sm:$0xff] %v1830
    // Predicated region
    $region22: #{tpu_custom_call.1} parent=1 // pred_check
      _
    $region23: #{tpu_custom_call.1} parent=1 // pred_check_branch
      %1833 = sbr.rel (0) target = $region25
    $region24: #{tpu_custom_call.1} parent=1 // pred_region
      %s1835 = ssub.s32 128, 128
      %1836 = vsyncadd [#allocation4], %s1835
      %s1838 = sshll.u32 [#allocation3], 4
      %s1839 = int_to_ptr.vmem [resolvable:$true] %s1838
      %1841 = dma.vmem_to_hbm [thread:$0]  %s1839, 128, %s5, [#allocation4]
    $region25: #{tpu_custom_call.1} parent=1 // pred_fallthru
      _
    // Predicated region
    $region26: #{tpu_custom_call.1} parent=1 // pred_check
      _
    $region27: #{tpu_custom_call.1} parent=1 // pred_check_branch
      %1843 = sbr.rel (0) target = $region29
    $region28: #{tpu_custom_call.1} parent=1 // pred_region
      %1844 = dma.done [#allocation4], 128
    $region29: #{tpu_custom_call.1} parent=1 // pred_fallthru
      _
    %1845 = vsyncpa [#allocation4], 1

</llo_original>
